<compile_context>
chip_gen: v6e
topology: v6e:2x2x1
jax: 0.10.0
libtpu: 0.0.40
codegen_flags: <defaults>
</compile_context>

<pallas_src>
import functools
import math

import jax
import jax.numpy as jnp
from jax.experimental import pallas as pl
from jax.experimental.pallas import tpu as pltpu


# ---------------------------------------------------------------------------
# Single fused kernel: in_proj + L GCN layers + SingleHeadAtt pool + MLP head
# ---------------------------------------------------------------------------

def _fused_forward_kernel(
    x_ref, w_in_ref, b_in_ref, adj_ref, gw_ref, gb_ref,      # graph + GNN params
    w0_ref, b0_ref, w1_ref, b1_ref, w2_ref, b2_ref,          # MLP head params
    z_ref, attn_ref,                                          # outputs
    *, inv_sqrt_dim, n_layers,
):
    # --- in_proj: h0 = x @ W_in + b_in ; h0 doubles as the attention query ------
    h0 = jnp.dot(x_ref[...], w_in_ref[...],
                 preferred_element_type=jnp.float32) + b_in_ref[...]

    adj = adj_ref[...]

    # --- L GCN layers, fully unrolled (static Python loop -> full LLO scheduler
    #     visibility, layer outputs stay in vregs, no VMEM-scratch round trips) ---
    #     h_{l+1} = tanh(A @ (h_l @ W_l) + b_l)
    hs = []
    h = h0
    for l in range(n_layers):
        hw = jnp.dot(h, gw_ref[l], preferred_element_type=jnp.float32)
        agg = jnp.dot(adj, hw, preferred_element_type=jnp.float32)
        h = jnp.tanh(agg + gb_ref[l])
        hs.append(h)

    # --- SingleHeadAtt.forward over the layer stack (key == value == [h1..hL],
    #     query == h0), unrolled over L so no [L, N, D] temporaries:
    #         score   = bmm(query, key^T) / sqrt(dim)
    #         attn    = softmax(score, -1)        (exact division, torch parity)
    #         context = bmm(attn, value)
    #     attn is written directly in the consumer's [N, L] orientation.
    # TODO(synk): verify against the reference model whether h0 (the in_proj
    # output) should also be part of the pooled key/value stack (here: query only).
    scores = [jnp.sum(h0 * hl, axis=-1, keepdims=True) * inv_sqrt_dim
              for hl in hs]                                   # L x [N, 1]
    m = scores[0]
    for s in scores[1:]:
        m = jnp.maximum(m, s)
    exps = [jnp.exp(s - m) for s in scores]
    denom = exps[0]
    for e in exps[1:]:
        denom = denom + e
    inv_denom = 1.0 / denom                                   # exact reciprocal

    ctx = None
    for l in range(n_layers):
        a_l = exps[l] * inv_denom                             # [N, 1]
        attn_ref[:, l:l + 1] = a_l.astype(attn_ref.dtype)     # column store -> [N, L]
        ctx = a_l * hs[l] if ctx is None else ctx + a_l * hs[l]

    # --- fused 3-layer MLP head over all N rows (4x redundant rows are trivial
    #     FLOPs at this size; ctx never leaves the chip, gather happens outside) ---
    z = jnp.dot(ctx, w0_ref[...], preferred_element_type=jnp.float32) + b0_ref[...]
    z = jnp.maximum(z, 0.0)
    z = jnp.dot(z, w1_ref[...], preferred_element_type=jnp.float32) + b1_ref[...]
    z = jnp.maximum(z, 0.0)
    z = jnp.dot(z, w2_ref[...], preferred_element_type=jnp.float32) + b2_ref[...]
    z_ref[...] = z.astype(z_ref.dtype)


def fused_forward(params, x, adj):
    """One gridless pallas_call: returns (z_all [N, task_dim], attn [N, L])."""
    N, _ = x.shape
    D = params["in_proj_w"].shape[1]
    L = params["gnn_w"].shape[0]
    H = params["mlp_w0"].shape[1]
    T = params["mlp_w2"].shape[1]

    kernel = functools.partial(
        _fused_forward_kernel,
        inv_sqrt_dim=1.0 / math.sqrt(float(D)),
        n_layers=L,
    )
    vmem = pl.BlockSpec(memory_space=pltpu.MemorySpace.VMEM)

    # TODO(synk): if N grows, tile adj as (tn, N) row blocks on a node-row grid axis
    # (v7x: 64 MiB physical / 32 MiB scoped-VMEM default) instead of whole-array VMEM.
    # TODO(synk): for real throughput, batch multiple graphs per call and/or pad D
    # toward 128 and cast matmul operands to bf16 on v6e/v7x -- at N=64/D=32 the MXU
    # and lanes are heavily underfilled and the kernel is dispatch-bound.
    return pl.pallas_call(
        kernel,
        out_shape=(jax.ShapeDtypeStruct((N, T), jnp.float32),   # MLP logits, all nodes
                   jax.ShapeDtypeStruct((N, L), jnp.float32)),  # attention weights
        in_specs=[vmem] * 12,
        out_specs=(vmem, vmem),
    )(
        x,
        params["in_proj_w"], params["in_proj_b"].reshape(1, D),
        adj,
        params["gnn_w"], params["gnn_b"],
        params["mlp_w0"], params["mlp_b0"].reshape(1, H),
        params["mlp_w1"], params["mlp_b1"].reshape(1, D),
        params["mlp_w2"], params["mlp_b2"].reshape(1, T),
    )


# ---------------------------------------------------------------------------
# Parameter construction (deterministic, synthetic)
# ---------------------------------------------------------------------------

def _xavier_uniform(key, fan_in, fan_out):
    limit = math.sqrt(6.0 / (fan_in + fan_out))
    return jax.random.uniform(key, (fan_in, fan_out), jnp.float32, -limit, limit)


def init_params(key, indim, outdim, task_dim, n_gnn_layers):
    keys = jax.random.split(key, 6 + n_gnn_layers)
    gnn_w = jnp.stack(
        [_xavier_uniform(keys[6 + l], outdim, outdim) for l in range(n_gnn_layers)],
        axis=0)                                                   # [L, D, D]
    gnn_b = jnp.zeros((n_gnn_layers, 1, outdim), jnp.float32)     # [L, 1, D]
    return {
        # nn.Linear(indim, outdim)
        "in_proj_w": _xavier_uniform(keys[0], indim, outdim),
        "in_proj_b": jnp.zeros((outdim,), jnp.float32),
        # SingleHeadAtt params (declared in __init__, unused in forward) — kept for parity
        "att_Wk": _xavier_uniform(keys[1], outdim, outdim),
        "att_Wq": _xavier_uniform(keys[2], outdim, outdim),
        # MLP([outdim, 2*outdim, outdim, task_dim])
        "mlp_w0": _xavier_uniform(keys[3], outdim, 2 * outdim),
        "mlp_b0": jnp.zeros((2 * outdim,), jnp.float32),
        "mlp_w1": _xavier_uniform(keys[4], 2 * outdim, outdim),
        "mlp_b1": jnp.zeros((outdim,), jnp.float32),
        "mlp_w2": _xavier_uniform(keys[5], outdim, task_dim),
        "mlp_b2": jnp.zeros((task_dim,), jnp.float32),
        # stand-in GNN layer weights (stacked for the fused kernel)
        "gnn_w": gnn_w,
        "gnn_b": gnn_b,
    }


# ---------------------------------------------------------------------------
# Model forward (add_rwpe=None, noise_feature=False, dropout=0.0)
# ---------------------------------------------------------------------------

def bin_graph_att_model_forward(params, x, adj, true_node_idx):
    # TODO(synk): self.model is an externally injected GNN; replaced here by a
    # deterministic L-layer GCN stand-in fused into the same kernel.
    z_all, attn = fused_forward(params, x, adj)          # [N, task_dim], [N, L]
    # class_emb = emb[g.true_nodes_mask]: boolean-mask indexing is dynamic-shape;
    # done as a tiny static-index gather on the kernel's [N, task_dim] output.
    z = z_all[true_node_idx]                             # [Nt, task_dim]
    return z, attn


# ---------------------------------------------------------------------------
# Main
# ---------------------------------------------------------------------------

if __name__ == "__main__":
    key = jax.random.PRNGKey(0)
    k_feat, k_adj, k_par = jax.random.split(key, 3)

    N = 64            # nodes
    indim = 16
    outdim = 32
    task_dim = 4
    n_gnn_layers = 3  # L

    # graph node features
    x = jax.random.normal(k_feat, (N, indim), jnp.float32)

    # deterministic normalized adjacency (with self loops) for the GNN stand-in
    a = jax.random.bernoulli(k_adj, 0.1, (N, N)).astype(jnp.float32)
    a = jnp.maximum(a, a.T) + jnp.eye(N, dtype=jnp.float32)
    adj = a / jnp.sum(a, axis=-1, keepdims=True)

    # g.true_nodes_mask -> static index set (every 4th node)
    true_node_idx = jnp.arange(0, N, 4)

    params = init_params(k_par, indim, outdim, task_dim, n_gnn_layers)

    out, attn = bin_graph_att_model_forward(params, x, adj, true_node_idx)
    out, attn = jax.block_until_ready((out, attn))
    assert out.shape == (true_node_idx.shape[0], task_dim)
    assert attn.shape == (N, n_gnn_layers)
    print("KERNEL_OK")
</pallas_src>

<mosaic_0001>
module attributes {stable_mosaic.version = 11 : i64} {
  func.func @_fused_forward_kernel(%arg0: memref<64x16xf32, #tpu.memory_space<vmem>>, %arg1: memref<16x32xf32, #tpu.memory_space<vmem>>, %arg2: memref<1x32xf32, #tpu.memory_space<vmem>>, %arg3: memref<64x64xf32, #tpu.memory_space<vmem>>, %arg4: memref<3x32x32xf32, #tpu.memory_space<vmem>>, %arg5: memref<3x1x32xf32, #tpu.memory_space<vmem>>, %arg6: memref<32x64xf32, #tpu.memory_space<vmem>>, %arg7: memref<1x64xf32, #tpu.memory_space<vmem>>, %arg8: memref<64x32xf32, #tpu.memory_space<vmem>>, %arg9: memref<1x32xf32, #tpu.memory_space<vmem>>, %arg10: memref<32x4xf32, #tpu.memory_space<vmem>>, %arg11: memref<1x4xf32, #tpu.memory_space<vmem>>, %arg12: memref<64x4xf32, #tpu.memory_space<vmem>>, %arg13: memref<64x3xf32, #tpu.memory_space<vmem>>) attributes {dimension_semantics = [], scalar_prefetch = 0 : i64, scratch_operands = 0 : i64, tpu.core_type = #tpu.core_type<tc>} {
    %c0 = arith.constant 0 : index
    %c0_0 = arith.constant 0 : index
    %0 = vector.load %arg0[%c0, %c0_0] : memref<64x16xf32, #tpu.memory_space<vmem>>, vector<64x16xf32>
    %c0_1 = arith.constant 0 : index
    %c0_2 = arith.constant 0 : index
    %1 = vector.load %arg1[%c0_1, %c0_2] : memref<16x32xf32, #tpu.memory_space<vmem>>, vector<16x32xf32>
    %cst = arith.constant dense<0.000000e+00> : vector<64x32xf32>
    %2 = tpu.matmul %0, %1, %cst {dimension_numbers = #tpu.dot_dimension_numbers<[1], [0], [0], [1], [0, 0, 1, 1], [], []>} : vector<64x16xf32>, vector<16x32xf32>, vector<64x32xf32> -> vector<64x32xf32>
    %c0_3 = arith.constant 0 : index
    %c0_4 = arith.constant 0 : index
    %3 = vector.load %arg2[%c0_3, %c0_4] : memref<1x32xf32, #tpu.memory_space<vmem>>, vector<1x32xf32>
    %4 = vector.broadcast %3 : vector<1x32xf32> to vector<64x32xf32>
    %5 = arith.addf %2, %4 : vector<64x32xf32>
    %c0_5 = arith.constant 0 : index
    %c0_6 = arith.constant 0 : index
    %6 = vector.load %arg3[%c0_5, %c0_6] : memref<64x64xf32, #tpu.memory_space<vmem>>, vector<64x64xf32>
    %c0_7 = arith.constant 0 : index
    %c0_8 = arith.constant 0 : index
    %c0_9 = arith.constant 0 : index
    %7 = vector.load %arg4[%c0_7, %c0_8, %c0_9] : memref<3x32x32xf32, #tpu.memory_space<vmem>>, vector<1x32x32xf32>
    %8 = vector.shape_cast %7 : vector<1x32x32xf32> to vector<32x32xf32>
    %cst_10 = arith.constant dense<0.000000e+00> : vector<64x32xf32>
    %9 = tpu.matmul %5, %8, %cst_10 {dimension_numbers = #tpu.dot_dimension_numbers<[1], [0], [0], [1], [0, 0, 1, 1], [], []>} : vector<64x32xf32>, vector<32x32xf32>, vector<64x32xf32> -> vector<64x32xf32>
    %cst_11 = arith.constant dense<0.000000e+00> : vector<64x32xf32>
    %10 = tpu.matmul %6, %9, %cst_11 {dimension_numbers = #tpu.dot_dimension_numbers<[1], [0], [0], [1], [0, 0, 1, 1], [], []>} : vector<64x64xf32>, vector<64x32xf32>, vector<64x32xf32> -> vector<64x32xf32>
    %c0_12 = arith.constant 0 : index
    %c0_13 = arith.constant 0 : index
    %c0_14 = arith.constant 0 : index
    %11 = vector.load %arg5[%c0_12, %c0_13, %c0_14] : memref<3x1x32xf32, #tpu.memory_space<vmem>>, vector<1x1x32xf32>
    %12 = vector.shape_cast %11 : vector<1x1x32xf32> to vector<1x32xf32>
    %13 = vector.broadcast %12 : vector<1x32xf32> to vector<64x32xf32>
    %14 = arith.addf %10, %13 : vector<64x32xf32>
    %15 = math.tanh %14 : vector<64x32xf32>
    %c1 = arith.constant 1 : index
    %c0_15 = arith.constant 0 : index
    %c0_16 = arith.constant 0 : index
    %16 = vector.load %arg4[%c1, %c0_15, %c0_16] : memref<3x32x32xf32, #tpu.memory_space<vmem>>, vector<1x32x32xf32>
    %17 = vector.shape_cast %16 : vector<1x32x32xf32> to vector<32x32xf32>
    %cst_17 = arith.constant dense<0.000000e+00> : vector<64x32xf32>
    %18 = tpu.matmul %15, %17, %cst_17 {dimension_numbers = #tpu.dot_dimension_numbers<[1], [0], [0], [1], [0, 0, 1, 1], [], []>} : vector<64x32xf32>, vector<32x32xf32>, vector<64x32xf32> -> vector<64x32xf32>
    %cst_18 = arith.constant dense<0.000000e+00> : vector<64x32xf32>
    %19 = tpu.matmul %6, %18, %cst_18 {dimension_numbers = #tpu.dot_dimension_numbers<[1], [0], [0], [1], [0, 0, 1, 1], [], []>} : vector<64x64xf32>, vector<64x32xf32>, vector<64x32xf32> -> vector<64x32xf32>
    %c1_19 = arith.constant 1 : index
    %c0_20 = arith.constant 0 : index
    %c0_21 = arith.constant 0 : index
    %20 = vector.load %arg5[%c1_19, %c0_20, %c0_21] : memref<3x1x32xf32, #tpu.memory_space<vmem>>, vector<1x1x32xf32>
    %21 = vector.shape_cast %20 : vector<1x1x32xf32> to vector<1x32xf32>
    %22 = vector.broadcast %21 : vector<1x32xf32> to vector<64x32xf32>
    %23 = arith.addf %19, %22 : vector<64x32xf32>
    %24 = math.tanh %23 : vector<64x32xf32>
    %c2 = arith.constant 2 : index
    %c0_22 = arith.constant 0 : index
    %c0_23 = arith.constant 0 : index
    %25 = vector.load %arg4[%c2, %c0_22, %c0_23] : memref<3x32x32xf32, #tpu.memory_space<vmem>>, vector<1x32x32xf32>
    %26 = vector.shape_cast %25 : vector<1x32x32xf32> to vector<32x32xf32>
    %cst_24 = arith.constant dense<0.000000e+00> : vector<64x32xf32>
    %27 = tpu.matmul %24, %26, %cst_24 {dimension_numbers = #tpu.dot_dimension_numbers<[1], [0], [0], [1], [0, 0, 1, 1], [], []>} : vector<64x32xf32>, vector<32x32xf32>, vector<64x32xf32> -> vector<64x32xf32>
    %cst_25 = arith.constant dense<0.000000e+00> : vector<64x32xf32>
    %28 = tpu.matmul %6, %27, %cst_25 {dimension_numbers = #tpu.dot_dimension_numbers<[1], [0], [0], [1], [0, 0, 1, 1], [], []>} : vector<64x64xf32>, vector<64x32xf32>, vector<64x32xf32> -> vector<64x32xf32>
    %c2_26 = arith.constant 2 : index
    %c0_27 = arith.constant 0 : index
    %c0_28 = arith.constant 0 : index
    %29 = vector.load %arg5[%c2_26, %c0_27, %c0_28] : memref<3x1x32xf32, #tpu.memory_space<vmem>>, vector<1x1x32xf32>
    %30 = vector.shape_cast %29 : vector<1x1x32xf32> to vector<1x32xf32>
    %31 = vector.broadcast %30 : vector<1x32xf32> to vector<64x32xf32>
    %32 = arith.addf %28, %31 : vector<64x32xf32>
    %33 = math.tanh %32 : vector<64x32xf32>
    %34 = arith.mulf %5, %15 : vector<64x32xf32>
    %cst_29 = arith.constant dense<0.000000e+00> : vector<64xf32>
    %35 = vector.multi_reduction <add>, %34, %cst_29 [1] : vector<64x32xf32> to vector<64xf32>
    %36 = vector.shape_cast %35 : vector<64xf32> to vector<64x1xf32>
    %cst_30 = arith.constant 0.176776692 : f32
    %37 = vector.broadcast %cst_30 : f32 to vector<64x1xf32>
    %38 = arith.mulf %36, %37 : vector<64x1xf32>
    %39 = arith.mulf %5, %24 : vector<64x32xf32>
    %cst_31 = arith.constant dense<0.000000e+00> : vector<64xf32>
    %40 = vector.multi_reduction <add>, %39, %cst_31 [1] : vector<64x32xf32> to vector<64xf32>
    %41 = vector.shape_cast %40 : vector<64xf32> to vector<64x1xf32>
    %cst_32 = arith.constant 0.176776692 : f32
    %42 = vector.broadcast %cst_32 : f32 to vector<64x1xf32>
    %43 = arith.mulf %41, %42 : vector<64x1xf32>
    %44 = arith.mulf %5, %33 : vector<64x32xf32>
    %cst_33 = arith.constant dense<0.000000e+00> : vector<64xf32>
    %45 = vector.multi_reduction <add>, %44, %cst_33 [1] : vector<64x32xf32> to vector<64xf32>
    %46 = vector.shape_cast %45 : vector<64xf32> to vector<64x1xf32>
    %cst_34 = arith.constant 0.176776692 : f32
    %47 = vector.broadcast %cst_34 : f32 to vector<64x1xf32>
    %48 = arith.mulf %46, %47 : vector<64x1xf32>
    %49 = arith.maximumf %38, %43 : vector<64x1xf32>
    %50 = arith.maximumf %49, %48 : vector<64x1xf32>
    %51 = arith.subf %38, %50 : vector<64x1xf32>
    %52 = math.exp %51 : vector<64x1xf32>
    %53 = arith.subf %43, %50 : vector<64x1xf32>
    %54 = math.exp %53 : vector<64x1xf32>
    %55 = arith.subf %48, %50 : vector<64x1xf32>
    %56 = math.exp %55 : vector<64x1xf32>
    %57 = arith.addf %52, %54 : vector<64x1xf32>
    %58 = arith.addf %57, %56 : vector<64x1xf32>
    %cst_35 = arith.constant 1.000000e+00 : f32
    %59 = vector.broadcast %cst_35 : f32 to vector<64x1xf32>
    %60 = arith.divf %59, %58 : vector<64x1xf32>
    %61 = arith.mulf %52, %60 : vector<64x1xf32>
    %c0_36 = arith.constant 0 : index
    %c0_37 = arith.constant 0 : index
    %62 = vector.load %arg13[%c0_36, %c0_37] : memref<64x3xf32, #tpu.memory_space<vmem>>, vector<64x1xf32>
    tpu.vector_store %arg13[%c0_36, %c0_37], %61 {strides = array<i32>} : memref<64x3xf32, #tpu.memory_space<vmem>>, vector<64x1xf32>,
    %63 = vector.broadcast %61 : vector<64x1xf32> to vector<64x32xf32>
    %64 = arith.mulf %63, %15 : vector<64x32xf32>
    %65 = arith.mulf %54, %60 : vector<64x1xf32>
    %c0_38 = arith.constant 0 : index
    %c1_39 = arith.constant 1 : index
    %66 = vector.load %arg13[%c0_38, %c1_39] : memref<64x3xf32, #tpu.memory_space<vmem>>, vector<64x1xf32>
    tpu.vector_store %arg13[%c0_38, %c1_39], %65 {strides = array<i32>} : memref<64x3xf32, #tpu.memory_space<vmem>>, vector<64x1xf32>,
    %67 = vector.broadcast %65 : vector<64x1xf32> to vector<64x32xf32>
    %68 = arith.mulf %67, %24 : vector<64x32xf32>
    %69 = arith.addf %64, %68 : vector<64x32xf32>
    %70 = arith.mulf %56, %60 : vector<64x1xf32>
    %c0_40 = arith.constant 0 : index
    %c2_41 = arith.constant 2 : index
    %71 = vector.load %arg13[%c0_40, %c2_41] : memref<64x3xf32, #tpu.memory_space<vmem>>, vector<64x1xf32>
    tpu.vector_store %arg13[%c0_40, %c2_41], %70 {strides = array<i32>} : memref<64x3xf32, #tpu.memory_space<vmem>>, vector<64x1xf32>,
    %72 = vector.broadcast %70 : vector<64x1xf32> to vector<64x32xf32>
    %73 = arith.mulf %72, %33 : vector<64x32xf32>
    %74 = arith.addf %69, %73 : vector<64x32xf32>
    %c0_42 = arith.constant 0 : index
    %c0_43 = arith.constant 0 : index
    %75 = vector.load %arg6[%c0_42, %c0_43] : memref<32x64xf32, #tpu.memory_space<vmem>>, vector<32x64xf32>
    %cst_44 = arith.constant dense<0.000000e+00> : vector<64x64xf32>
    %76 = tpu.matmul %74, %75, %cst_44 {dimension_numbers = #tpu.dot_dimension_numbers<[1], [0], [0], [1], [0, 0, 1, 1], [], []>} : vector<64x32xf32>, vector<32x64xf32>, vector<64x64xf32> -> vector<64x64xf32>
    %c0_45 = arith.constant 0 : index
    %c0_46 = arith.constant 0 : index
    %77 = vector.load %arg7[%c0_45, %c0_46] : memref<1x64xf32, #tpu.memory_space<vmem>>, vector<1x64xf32>
    %78 = vector.broadcast %77 : vector<1x64xf32> to vector<64x64xf32>
    %79 = arith.addf %76, %78 : vector<64x64xf32>
    %cst_47 = arith.constant 0.000000e+00 : f32
    %80 = vector.broadcast %cst_47 : f32 to vector<64x64xf32>
    %81 = arith.maximumf %79, %80 : vector<64x64xf32>
    %c0_48 = arith.constant 0 : index
    %c0_49 = arith.constant 0 : index
    %82 = vector.load %arg8[%c0_48, %c0_49] : memref<64x32xf32, #tpu.memory_space<vmem>>, vector<64x32xf32>
    %cst_50 = arith.constant dense<0.000000e+00> : vector<64x32xf32>
    %83 = tpu.matmul %81, %82, %cst_50 {dimension_numbers = #tpu.dot_dimension_numbers<[1], [0], [0], [1], [0, 0, 1, 1], [], []>} : vector<64x64xf32>, vector<64x32xf32>, vector<64x32xf32> -> vector<64x32xf32>
    %c0_51 = arith.constant 0 : index
    %c0_52 = arith.constant 0 : index
    %84 = vector.load %arg9[%c0_51, %c0_52] : memref<1x32xf32, #tpu.memory_space<vmem>>, vector<1x32xf32>
    %85 = vector.broadcast %84 : vector<1x32xf32> to vector<64x32xf32>
    %86 = arith.addf %83, %85 : vector<64x32xf32>
    %cst_53 = arith.constant 0.000000e+00 : f32
    %87 = vector.broadcast %cst_53 : f32 to vector<64x32xf32>
    %88 = arith.maximumf %86, %87 : vector<64x32xf32>
    %c0_54 = arith.constant 0 : index
    %c0_55 = arith.constant 0 : index
    %89 = vector.load %arg10[%c0_54, %c0_55] : memref<32x4xf32, #tpu.memory_space<vmem>>, vector<32x4xf32>
    %cst_56 = arith.constant dense<0.000000e+00> : vector<64x4xf32>
    %90 = tpu.matmul %88, %89, %cst_56 {dimension_numbers = #tpu.dot_dimension_numbers<[1], [0], [0], [1], [0, 0, 1, 1], [], []>} : vector<64x32xf32>, vector<32x4xf32>, vector<64x4xf32> -> vector<64x4xf32>
    %c0_57 = arith.constant 0 : index
    %c0_58 = arith.constant 0 : index
    %91 = vector.load %arg11[%c0_57, %c0_58] : memref<1x4xf32, #tpu.memory_space<vmem>>, vector<1x4xf32>
    %92 = vector.broadcast %91 : vector<1x4xf32> to vector<64x4xf32>
    %93 = arith.addf %90, %92 : vector<64x4xf32>
    %c0_59 = arith.constant 0 : index
    %c0_60 = arith.constant 0 : index
    %94 = vector.load %arg12[%c0_59, %c0_60] : memref<64x4xf32, #tpu.memory_space<vmem>>, vector<64x4xf32>
    tpu.vector_store %arg12[%c0_59, %c0_60], %93 {strides = array<i32>} : memref<64x4xf32, #tpu.memory_space<vmem>>, vector<64x4xf32>,
    return
  }
}

</mosaic_0001>

<llo_original>
// kernel: tpu_custom_call.1
$region0: #{tpu_custom_call.1}
  #allocation0 [shape = 'u32[]', space=smem, size = 0x4, offset = 0x4, fixed_abs, tag = 'smem constant byte address 0x4 - core index']
  #allocation1 [shape = 'u32[144,128]{1,0:T(1,128)}', space=vmem, size = 0x12000, scoped, tag = 'internal scratch']
  %s0 = inlined_call_operand.vmem [shape: f32[64,16], index: 0, kind: input, shape index: {}]
  %s1 = inlined_call_operand.hbm [shape: f32[16,32], index: 1, kind: input, shape index: {}]
  %s2 = inlined_call_operand.hbm [shape: f32[1,32], index: 2, kind: input, shape index: {}]
  %s3 = inlined_call_operand.vmem [shape: f32[64,64], index: 3, kind: input, shape index: {}]
  %s4 = inlined_call_operand.vmem [shape: f32[3,32,32], index: 4, kind: input, shape index: {}]
  %s5 = inlined_call_operand.hbm [shape: f32[3,1,32], index: 5, kind: input, shape index: {}]
  %s6 = inlined_call_operand.vmem [shape: f32[32,64], index: 6, kind: input, shape index: {}]
  %s7 = inlined_call_operand.hbm [shape: f32[1,64], index: 7, kind: input, shape index: {}]
  %s8 = inlined_call_operand.vmem [shape: f32[64,32], index: 8, kind: input, shape index: {}]
  %s9 = inlined_call_operand.hbm [shape: f32[1,32], index: 9, kind: input, shape index: {}]
  %s10 = inlined_call_operand.vmem [shape: f32[32,4], index: 10, kind: input, shape index: {}]
  %s11 = inlined_call_operand.vmem [shape: f32[1,4], index: 11, kind: input, shape index: {}]
  %s12 = inlined_call_operand.vmem [shape: f32[64,4], index: 12, kind: output, shape index: {0}]
  %s13 = inlined_call_operand.vmem [shape: f32[64,3], index: 13, kind: output, shape index: {1}]
  %14 = xla_tuple %s12, %s13
  %s15 = sld [smem:[#allocation0]]
  $region86: #{tpu_custom_call.1} parent=0
    _
  %s17 = ssub.s32 1, %s15
  %s18 = scalar_select 0, %s17, %s15
  $region1: #{tpu_custom_call.1} parent=0
    #allocation2 [shape = 'u8[8192]{0}', space=vmem, size = 0x2000, scoped, tag = 'input window, operand 1, single buffered']
    #allocation3 [shape = 's32[1]{0}', space=sflag, size = 0x4, scoped, tag = 'scoped memory for tpu_custom_call.1']
    #allocation4 [shape = 'u8[512]{0}', space=vmem, size = 0x400, scoped, tag = 'input window, operand 2, single buffered']
    #allocation5 [shape = 's32[1]{0}', space=sflag, size = 0x4, scoped, tag = 'scoped memory for tpu_custom_call.1']
    #allocation6 [shape = 'u8[1536]{0}', space=vmem, size = 0x800, scoped, tag = 'input window, operand 5, single buffered']
    #allocation7 [shape = 'u8[512]{0}', space=vmem, size = 0x400, scoped, tag = 'input window, operand 7, single buffered']
    #allocation8 [shape = 's32[1]{0}', space=sflag, size = 0x4, scoped, tag = 'scoped memory for tpu_custom_call.1']
    #allocation9 [shape = 'u8[512]{0}', space=vmem, size = 0x400, scoped, tag = 'input window, operand 9, single buffered']
    %19 = vsyncpa [#allocation3], 0
    %20 = vsyncpa [#allocation5], 0
    %21 = vsyncpa [#allocation8], 0
    // Predicated region
    $region2: #{tpu_custom_call.1} parent=1 // pred_check
      _
    $region3: #{tpu_custom_call.1} parent=1 // pred_check_branch
      %23 = sbr.rel (0) target = $region5
    $region4: #{tpu_custom_call.1} parent=1 // pred_region
      _
    $region5: #{tpu_custom_call.1} parent=1 // pred_fallthru
      _
    // Predicated region
    $region6: #{tpu_custom_call.1} parent=1 // pred_check
      _
    $region7: #{tpu_custom_call.1} parent=1 // pred_check_branch
      %25 = sbr.rel (0) target = $region9
    $region8: #{tpu_custom_call.1} parent=1 // pred_region
      %s27 = ssub.s32 256, 256
      %28 = vsyncadd [#allocation3], %s27
      %s29 = sshll.u32 [#allocation2], 4
      %s30 = int_to_ptr.vmem [resolvable:$true] %s29
      %35 = dma.hbm_to_vmem [thread:$0]  %s1, 256, %s30, [#allocation3], 128, 128, 8
    $region9: #{tpu_custom_call.1} parent=1 // pred_fallthru
      _
    // Predicated region
    $region10: #{tpu_custom_call.1} parent=1 // pred_check
      _
    $region11: #{tpu_custom_call.1} parent=1 // pred_check_branch
      %37 = sbr.rel (0) target = $region13
    $region12: #{tpu_custom_call.1} parent=1 // pred_region
      %s39 = ssub.s32 16, 16
      %40 = vsyncadd [#allocation5], %s39
      %s42 = sshll.u32 [#allocation4], 4
      %s43 = int_to_ptr.vmem [resolvable:$true] %s42
      %45 = dma.hbm_to_vmem [thread:$0]  %s2, 16, %s43, [#allocation5]
    $region13: #{tpu_custom_call.1} parent=1 // pred_fallthru
      _
    // Predicated region
    $region14: #{tpu_custom_call.1} parent=1 // pred_check
      _
    $region15: #{tpu_custom_call.1} parent=1 // pred_check_branch
      %47 = sbr.rel (0) target = $region17
    $region16: #{tpu_custom_call.1} parent=1 // pred_region
      _
    $region17: #{tpu_custom_call.1} parent=1 // pred_fallthru
      _
    // Predicated region
    $region18: #{tpu_custom_call.1} parent=1 // pred_check
      _
    $region19: #{tpu_custom_call.1} parent=1 // pred_check_branch
      %49 = sbr.rel (0) target = $region21
    $region20: #{tpu_custom_call.1} parent=1 // pred_region
      _
    $region21: #{tpu_custom_call.1} parent=1 // pred_fallthru
      _
    // Predicated region
    $region22: #{tpu_custom_call.1} parent=1 // pred_check
      _
    $region23: #{tpu_custom_call.1} parent=1 // pred_check_branch
      %51 = sbr.rel (0) target = $region25
    $region24: #{tpu_custom_call.1} parent=1 // pred_region
      %s53 = ssub.s32 48, 48
      %54 = vsyncadd [#allocation5], %s53
      %s55 = sshll.u32 [#allocation6], 4
      %s56 = int_to_ptr.vmem [resolvable:$true] %s55
      %61 = dma.hbm_to_vmem [thread:$0]  %s5, 48, %s56, [#allocation5], 16, 16, 1
    $region25: #{tpu_custom_call.1} parent=1 // pred_fallthru
      _
    // Predicated region
    $region26: #{tpu_custom_call.1} parent=1 // pred_check
      _
    $region27: #{tpu_custom_call.1} parent=1 // pred_check_branch
      %63 = sbr.rel (0) target = $region29
    $region28: #{tpu_custom_call.1} parent=1 // pred_region
      _
    $region29: #{tpu_custom_call.1} parent=1 // pred_fallthru
      _
    // Predicated region
    $region30: #{tpu_custom_call.1} parent=1 // pred_check
      _
    $region31: #{tpu_custom_call.1} parent=1 // pred_check_branch
      %65 = sbr.rel (0) target = $region33
    $region32: #{tpu_custom_call.1} parent=1 // pred_region
      %s67 = ssub.s32 16, 16
      %68 = vsyncadd [#allocation8], %s67
      %s70 = sshll.u32 [#allocation7], 4
      %s71 = int_to_ptr.vmem [resolvable:$true] %s70
      %73 = dma.hbm_to_vmem [thread:$0]  %s7, 16, %s71, [#allocation8]
    $region33: #{tpu_custom_call.1} parent=1 // pred_fallthru
      _
    // Predicated region
    $region34: #{tpu_custom_call.1} parent=1 // pred_check
      _
    $region35: #{tpu_custom_call.1} parent=1 // pred_check_branch
      %75 = sbr.rel (0) target = $region37
    $region36: #{tpu_custom_call.1} parent=1 // pred_region
      _
    $region37: #{tpu_custom_call.1} parent=1 // pred_fallthru
      _
    // Predicated region
    $region38: #{tpu_custom_call.1} parent=1 // pred_check
      _
    $region39: #{tpu_custom_call.1} parent=1 // pred_check_branch
      %77 = sbr.rel (0) target = $region41
    $region40: #{tpu_custom_call.1} parent=1 // pred_region
      %s79 = ssub.s32 16, 16
      %80 = vsyncadd [#allocation8], %s79
      %s82 = sshll.u32 [#allocation9], 4
      %s83 = int_to_ptr.vmem [resolvable:$true] %s82
      %85 = dma.hbm_to_vmem [thread:$0]  %s9, 16, %s83, [#allocation8]
    $region41: #{tpu_custom_call.1} parent=1 // pred_fallthru
      _
    // Predicated region
    $region42: #{tpu_custom_call.1} parent=1 // pred_check
      _
    $region43: #{tpu_custom_call.1} parent=1 // pred_check_branch
      %87 = sbr.rel (0) target = $region45
    $region44: #{tpu_custom_call.1} parent=1 // pred_region
      _
    $region45: #{tpu_custom_call.1} parent=1 // pred_fallthru
      _
    // Predicated region
    $region46: #{tpu_custom_call.1} parent=1 // pred_check
      _
    $region47: #{tpu_custom_call.1} parent=1 // pred_check_branch
      %89 = sbr.rel (0) target = $region49
    $region48: #{tpu_custom_call.1} parent=1 // pred_region
      _
    $region49: #{tpu_custom_call.1} parent=1 // pred_fallthru
      _
    // Predicated region
    $region50: #{tpu_custom_call.1} parent=1 // pred_check
      _
    $region51: #{tpu_custom_call.1} parent=1 // pred_check_branch
      %91 = sbr.rel (0) target = $region53
    $region52: #{tpu_custom_call.1} parent=1 // pred_region
      %92 = dma.done [#allocation3], 256
    $region53: #{tpu_custom_call.1} parent=1 // pred_fallthru
      _
    // Predicated region
    $region54: #{tpu_custom_call.1} parent=1 // pred_check
      _
    $region55: #{tpu_custom_call.1} parent=1 // pred_check_branch
      %94 = sbr.rel (0) target = $region57
    $region56: #{tpu_custom_call.1} parent=1 // pred_region
      %95 = dma.done [#allocation5], 16
    $region57: #{tpu_custom_call.1} parent=1 // pred_fallthru
      _
    // Predicated region
    $region58: #{tpu_custom_call.1} parent=1 // pred_check
      _
    $region59: #{tpu_custom_call.1} parent=1 // pred_check_branch
      %97 = sbr.rel (0) target = $region61
    $region60: #{tpu_custom_call.1} parent=1 // pred_region
      %98 = dma.done [#allocation5], 48
    $region61: #{tpu_custom_call.1} parent=1 // pred_fallthru
      _
    // Predicated region
    $region62: #{tpu_custom_call.1} parent=1 // pred_check
      _
    $region63: #{tpu_custom_call.1} parent=1 // pred_check_branch
      %100 = sbr.rel (0) target = $region65
    $region64: #{tpu_custom_call.1} parent=1 // pred_region
      %101 = dma.done [#allocation8], 16
    $region65: #{tpu_custom_call.1} parent=1 // pred_fallthru
      _
    // Predicated region
    $region66: #{tpu_custom_call.1} parent=1 // pred_check
      _
    $region67: #{tpu_custom_call.1} parent=1 // pred_check_branch
      %103 = sbr.rel (0) target = $region69
    $region68: #{tpu_custom_call.1} parent=1 // pred_region
      %104 = dma.done [#allocation8], 16
    $region69: #{tpu_custom_call.1} parent=1 // pred_fallthru
      _
    %v105 = vld [vmem:[%s0] sm:$0xff]
    %v106 = vld [vmem:[%s0 + $0x8] sm:$0xff]
    %v107 = vld [vmem:[%s0 + $0x10] sm:$0xff]
    %v108 = vld [vmem:[%s0 + $0x18] sm:$0xff]
    %v109 = vld [vmem:[%s0 + $0x20] sm:$0xff]
    %v110 = vld [vmem:[%s0 + $0x28] sm:$0xff]
    %v111 = vld [vmem:[%s0 + $0x30] sm:$0xff]
    %v112 = vld [vmem:[%s0 + $0x38] sm:$0xff]
    %v113 = vld [vmem:[#allocation2] sm:$0xff]
    %v114 = vld [vmem:[#allocation2 + $0x8] sm:$0xff]
    %v115 = vld [vmem:[#allocation4] sm:$0x1]
    %v117 = vlaneseq
    %v118 = vshrl.u32 %v117, 7
    %v119 = vsub.s32 0, %v118
    %v120 = vrot.slane %v115, %v119
    %vm122 = vcmask 130048
    %v124 = vsel %vm122, %v105, 0
    %v127 = vsel %vm122, %v106, 0
    %v130 = vsel %vm122, %v107, 0
    %v133 = vsel %vm122, %v108, 0
    %v136 = vsel %vm122, %v109, 0
    %v139 = vsel %vm122, %v110, 0
    %v142 = vsel %vm122, %v111, 0
    %v145 = vsel %vm122, %v112, 0
    %147 = vmatprep.subr.mxu0 0.0
    %148 = vmatpush1.msra.mxu0 0.0
    %149 = vmatprep.subr.mxu0 0.0
    %150 = vmatpush1.msra.mxu0 0.0
    %151 = vmatprep.subr.mxu0 0.0
    %152 = vmatpush1.msra.mxu0 0.0
    %153 = vmatprep.subr.mxu0 0.0
    %154 = vmatpush1.msra.mxu0 0.0
    %155 = vmatprep.subr.mxu0 0.0
    %156 = vmatpush1.msra.mxu0 0.0
    %157 = vmatprep.subr.mxu0 0.0
    %158 = vmatpush1.msra.mxu0 0.0
    %159 = vmatprep.subr.mxu0 0.0
    %160 = vmatpush1.msra.mxu0 0.0
    %161 = vmatprep.subr.mxu0 0.0
    %162 = vmatpush1.msra.mxu0 0.0
    %163 = vmatprep.subr.mxu0 0.0
    %164 = vmatpush1.msra.mxu0 0.0
    %165 = vmatprep.subr.mxu0 0.0
    %166 = vmatpush1.msra.mxu0 0.0
    %167 = vmatprep.subr.mxu0 0.0
    %168 = vmatpush1.msra.mxu0 0.0
    %169 = vmatprep.subr.mxu0 0.0
    %170 = vmatpush1.msra.mxu0 0.0
    %171 = vmatprep.subr.mxu0 0.0
    %172 = vmatpush1.msra.mxu0 0.0
    %173 = vmatprep.subr.mxu0 0.0
    %174 = vmatpush1.msra.mxu0 0.0
    %175 = vmatprep.subr.mxu0 0.0
    %176 = vmatpush1.msra.mxu0 %v114
    %177 = vmatprep.subr.mxu0 0.0
    %178 = vmatpush1.msra.mxu0 %v113
    %179 = vmatprep.subr.mxu0 0.0
    %180 = vmatpush2.msra.mxu0 0.0
    %181 = vmatprep.subr.mxu0 0.0
    %182 = vmatpush2.msra.mxu0 0.0
    %183 = vmatprep.subr.mxu0 0.0
    %184 = vmatpush2.msra.mxu0 0.0
    %185 = vmatprep.subr.mxu0 0.0
    %186 = vmatpush2.msra.mxu0 0.0
    %187 = vmatprep.subr.mxu0 0.0
    %188 = vmatpush2.msra.mxu0 0.0
    %189 = vmatprep.subr.mxu0 0.0
    %190 = vmatpush2.msra.mxu0 0.0
    %191 = vmatprep.subr.mxu0 0.0
    %192 = vmatpush2.msra.mxu0 0.0
    %193 = vmatprep.subr.mxu0 0.0
    %194 = vmatpush2.msra.mxu0 0.0
    %195 = vmatprep.subr.mxu0 0.0
    %196 = vmatpush2.msra.mxu0 0.0
    %197 = vmatprep.subr.mxu0 0.0
    %198 = vmatpush2.msra.mxu0 0.0
    %199 = vmatprep.subr.mxu0 0.0
    %200 = vmatpush2.msra.mxu0 0.0
    %201 = vmatprep.subr.mxu0 0.0
    %202 = vmatpush2.msra.mxu0 0.0
    %203 = vmatprep.subr.mxu0 0.0
    %204 = vmatpush2.msra.mxu0 0.0
    %205 = vmatprep.subr.mxu0 0.0
    %206 = vmatpush2.msra.mxu0 0.0
    %207 = vmatprep.subr.mxu0 0.0
    %208 = vmatpush2.msra.mxu0 0.0
    %209 = vmatprep.subr.mxu0 0.0
    %210 = vmatpush2.msra.mxu0 0.0
    %211 = vmatprep.mubr.f32.mxu0 0.0
    %212 = vmatmul.mubr.f32.gmra.mxu0 %v124
    %v213 = vpop.f32.mrf.mxu0
    %v214 = vadd.f32 %v120, %v213
    %v215 = vpop.f32.mrf.mxu0
    %216 = vmatprep.mubr.f32.mxu0 0.0
    %217 = vmatmul.mubr.f32.gmra.mxu0 %v127
    %v218 = vpop.f32.mrf.mxu0
    %v219 = vadd.f32 %v120, %v218
    %v220 = vpop.f32.mrf.mxu0
    %221 = vmatprep.mubr.f32.mxu0 0.0
    %222 = vmatmul.mubr.f32.gmra.mxu0 %v130
    %v223 = vpop.f32.mrf.mxu0
    %v224 = vadd.f32 %v120, %v223
    %v225 = vpop.f32.mrf.mxu0
    %226 = vmatprep.mubr.f32.mxu0 0.0
    %227 = vmatmul.mubr.f32.gmra.mxu0 %v133
    %v228 = vpop.f32.mrf.mxu0
    %v229 = vadd.f32 %v120, %v228
    %v230 = vpop.f32.mrf.mxu0
    %231 = vmatprep.mubr.f32.mxu0 0.0
    %232 = vmatmul.mubr.f32.gmra.mxu0 %v136
    %v233 = vpop.f32.mrf.mxu0
    %v234 = vadd.f32 %v120, %v233
    %v235 = vpop.f32.mrf.mxu0
    %236 = vmatprep.mubr.f32.mxu0 0.0
    %237 = vmatmul.mubr.f32.gmra.mxu0 %v139
    %v238 = vpop.f32.mrf.mxu0
    %v239 = vadd.f32 %v120, %v238
    %v240 = vpop.f32.mrf.mxu0
    %241 = vmatprep.mubr.f32.mxu0 0.0
    %242 = vmatmul.mubr.f32.gmra.mxu0 %v142
    %v243 = vpop.f32.mrf.mxu0
    %v244 = vadd.f32 %v120, %v243
    %v245 = vpop.f32.mrf.mxu0
    %246 = vmatprep.mubr.f32.mxu0 0.0
    %247 = vmatmul.mubr.f32.gmra.mxu0 %v145
    %v248 = vpop.f32.mrf.mxu0
    %v249 = vadd.f32 %v120, %v248
    %v250 = vpop.f32.mrf.mxu0
    %251 = vdwg.mxu0
    %v252 = vld [vmem:[%s3] sm:$0xff]
    %v253 = vld [vmem:[%s3 + $0x8] sm:$0xff]
    %v254 = vld [vmem:[%s3 + $0x10] sm:$0xff]
    %v255 = vld [vmem:[%s3 + $0x18] sm:$0xff]
    %v256 = vld [vmem:[%s3 + $0x20] sm:$0xff]
    %v257 = vld [vmem:[%s3 + $0x28] sm:$0xff]
    %v258 = vld [vmem:[%s3 + $0x30] sm:$0xff]
    %v259 = vld [vmem:[%s3 + $0x38] sm:$0xff]
    %v260 = vld [vmem:[%s4] sm:$0xff]
    %v261 = vld [vmem:[%s4 + $0x8] sm:$0xff]
    %v262 = vld [vmem:[%s4 + $0x10] sm:$0xff]
    %v263 = vld [vmem:[%s4 + $0x18] sm:$0xff]
    %vm264 = vcmask 261120
    %v266 = vsel %vm264, %v214, 0
    %v269 = vsel %vm264, %v219, 0
    %v272 = vsel %vm264, %v224, 0
    %v275 = vsel %vm264, %v229, 0
    %v278 = vsel %vm264, %v234, 0
    %v281 = vsel %vm264, %v239, 0
    %v284 = vsel %vm264, %v244, 0
    %v287 = vsel %vm264, %v249, 0
    %289 = vmatprep.subr.mxu0 0.0
    %290 = vmatpush1.msra.mxu0 0.0
    %291 = vmatprep.subr.mxu0 0.0
    %292 = vmatpush1.msra.mxu0 0.0
    %293 = vmatprep.subr.mxu0 0.0
    %294 = vmatpush1.msra.mxu0 0.0
    %295 = vmatprep.subr.mxu0 0.0
    %296 = vmatpush1.msra.mxu0 0.0
    %297 = vmatprep.subr.mxu0 0.0
    %298 = vmatpush1.msra.mxu0 0.0
    %299 = vmatprep.subr.mxu0 0.0
    %300 = vmatpush1.msra.mxu0 0.0
    %301 = vmatprep.subr.mxu0 0.0
    %302 = vmatpush1.msra.mxu0 0.0
    %303 = vmatprep.subr.mxu0 0.0
    %304 = vmatpush1.msra.mxu0 0.0
    %305 = vmatprep.subr.mxu0 0.0
    %306 = vmatpush1.msra.mxu0 0.0
    %307 = vmatprep.subr.mxu0 0.0
    %308 = vmatpush1.msra.mxu0 0.0
    %309 = vmatprep.subr.mxu0 0.0
    %310 = vmatpush1.msra.mxu0 0.0
    %311 = vmatprep.subr.mxu0 0.0
    %312 = vmatpush1.msra.mxu0 0.0
    %313 = vmatprep.subr.mxu0 0.0
    %314 = vmatpush1.msra.mxu0 %v263
    %315 = vmatprep.subr.mxu0 0.0
    %316 = vmatpush1.msra.mxu0 %v262
    %317 = vmatprep.subr.mxu0 0.0
    %318 = vmatpush1.msra.mxu0 %v261
    %319 = vmatprep.subr.mxu0 0.0
    %320 = vmatpush1.msra.mxu0 %v260
    %321 = vmatprep.subr.mxu0 0.0
    %322 = vmatpush2.msra.mxu0 0.0
    %323 = vmatprep.subr.mxu0 0.0
    %324 = vmatpush2.msra.mxu0 0.0
    %325 = vmatprep.subr.mxu0 0.0
    %326 = vmatpush2.msra.mxu0 0.0
    %327 = vmatprep.subr.mxu0 0.0
    %328 = vmatpush2.msra.mxu0 0.0
    %329 = vmatprep.subr.mxu0 0.0
    %330 = vmatpush2.msra.mxu0 0.0
    %331 = vmatprep.subr.mxu0 0.0
    %332 = vmatpush2.msra.mxu0 0.0
    %333 = vmatprep.subr.mxu0 0.0
    %334 = vmatpush2.msra.mxu0 0.0
    %335 = vmatprep.subr.mxu0 0.0
    %336 = vmatpush2.msra.mxu0 0.0
    %337 = vmatprep.subr.mxu0 0.0
    %338 = vmatpush2.msra.mxu0 0.0
    %339 = vmatprep.subr.mxu0 0.0
    %340 = vmatpush2.msra.mxu0 0.0
    %341 = vmatprep.subr.mxu0 0.0
    %342 = vmatpush2.msra.mxu0 0.0
    %343 = vmatprep.subr.mxu0 0.0
    %344 = vmatpush2.msra.mxu0 0.0
    %345 = vmatprep.subr.mxu0 0.0
    %346 = vmatpush2.msra.mxu0 0.0
    %347 = vmatprep.subr.mxu0 0.0
    %348 = vmatpush2.msra.mxu0 0.0
    %349 = vmatprep.subr.mxu0 0.0
    %350 = vmatpush2.msra.mxu0 0.0
    %351 = vmatprep.subr.mxu0 0.0
    %352 = vmatpush2.msra.mxu0 0.0
    %353 = vmatprep.mubr.f32.mxu0 0.0
    %354 = vmatmul.mubr.f32.gmra.mxu0 %v266
    %v355 = vpop.f32.mrf.mxu0
    %v356 = vadd.f32 0.0, %v355
    %v357 = vpop.f32.mrf.mxu0
    %358 = vmatprep.mubr.f32.mxu0 0.0
    %359 = vmatmul.mubr.f32.gmra.mxu0 %v269
    %v360 = vpop.f32.mrf.mxu0
    %v361 = vadd.f32 0.0, %v360
    %v362 = vpop.f32.mrf.mxu0
    %363 = vmatprep.mubr.f32.mxu0 0.0
    %364 = vmatmul.mubr.f32.gmra.mxu0 %v272
    %v365 = vpop.f32.mrf.mxu0
    %v366 = vadd.f32 0.0, %v365
    %v367 = vpop.f32.mrf.mxu0
    %368 = vmatprep.mubr.f32.mxu0 0.0
    %369 = vmatmul.mubr.f32.gmra.mxu0 %v275
    %v370 = vpop.f32.mrf.mxu0
    %v371 = vadd.f32 0.0, %v370
    %v372 = vpop.f32.mrf.mxu0
    %373 = vmatprep.mubr.f32.mxu0 0.0
    %374 = vmatmul.mubr.f32.gmra.mxu0 %v278
    %v375 = vpop.f32.mrf.mxu0
    %v376 = vadd.f32 0.0, %v375
    %v377 = vpop.f32.mrf.mxu0
    %378 = vmatprep.mubr.f32.mxu0 0.0
    %379 = vmatmul.mubr.f32.gmra.mxu0 %v281
    %v380 = vpop.f32.mrf.mxu0
    %v381 = vadd.f32 0.0, %v380
    %v382 = vpop.f32.mrf.mxu0
    %383 = vmatprep.mubr.f32.mxu0 0.0
    %384 = vmatmul.mubr.f32.gmra.mxu0 %v284
    %v385 = vpop.f32.mrf.mxu0
    %v386 = vadd.f32 0.0, %v385
    %v387 = vpop.f32.mrf.mxu0
    %388 = vmatprep.mubr.f32.mxu0 0.0
    %389 = vmatmul.mubr.f32.gmra.mxu0 %v287
    %v390 = vpop.f32.mrf.mxu0
    %v391 = vadd.f32 0.0, %v390
    %v392 = vpop.f32.mrf.mxu0
    %393 = vdwg.mxu0
    %v394 = vld [vmem:[#allocation6] sm:$0x1]
    %v396 = vlaneseq
    %v397 = vshrl.u32 %v396, 7
    %v398 = vsub.s32 0, %v397
    %v399 = vrot.slane %v394, %v398
    %vm401 = vcmask 523264
    %v403 = vsel %vm401, %v252, 0
    %v406 = vsel %vm401, %v253, 0
    %v409 = vsel %vm401, %v254, 0
    %v412 = vsel %vm401, %v255, 0
    %v415 = vsel %vm401, %v256, 0
    %v418 = vsel %vm401, %v257, 0
    %v421 = vsel %vm401, %v258, 0
    %v424 = vsel %vm401, %v259, 0
    %426 = vmatprep.subr.mxu0 0.0
    %427 = vmatpush1.msra.mxu0 0.0
    %428 = vmatprep.subr.mxu0 0.0
    %429 = vmatpush1.msra.mxu0 0.0
    %430 = vmatprep.subr.mxu0 0.0
    %431 = vmatpush1.msra.mxu0 0.0
    %432 = vmatprep.subr.mxu0 0.0
    %433 = vmatpush1.msra.mxu0 0.0
    %434 = vmatprep.subr.mxu0 0.0
    %435 = vmatpush1.msra.mxu0 0.0
    %436 = vmatprep.subr.mxu0 0.0
    %437 = vmatpush1.msra.mxu0 0.0
    %438 = vmatprep.subr.mxu0 0.0
    %439 = vmatpush1.msra.mxu0 0.0
    %440 = vmatprep.subr.mxu0 0.0
    %441 = vmatpush1.msra.mxu0 0.0
    %442 = vmatprep.subr.mxu0 0.0
    %443 = vmatpush1.msra.mxu0 %v391
    %444 = vmatprep.subr.mxu0 0.0
    %445 = vmatpush1.msra.mxu0 %v386
    %446 = vmatprep.subr.mxu0 0.0
    %447 = vmatpush1.msra.mxu0 %v381
    %448 = vmatprep.subr.mxu0 0.0
    %449 = vmatpush1.msra.mxu0 %v376
    %450 = vmatprep.subr.mxu0 0.0
    %451 = vmatpush1.msra.mxu0 %v371
    %452 = vmatprep.subr.mxu0 0.0
    %453 = vmatpush1.msra.mxu0 %v366
    %454 = vmatprep.subr.mxu0 0.0
    %455 = vmatpush1.msra.mxu0 %v361
    %456 = vmatprep.subr.mxu0 0.0
    %457 = vmatpush1.msra.mxu0 %v356
    %458 = vmatprep.subr.mxu0 0.0
    %459 = vmatpush2.msra.mxu0 0.0
    %460 = vmatprep.subr.mxu0 0.0
    %461 = vmatpush2.msra.mxu0 0.0
    %462 = vmatprep.subr.mxu0 0.0
    %463 = vmatpush2.msra.mxu0 0.0
    %464 = vmatprep.subr.mxu0 0.0
    %465 = vmatpush2.msra.mxu0 0.0
    %466 = vmatprep.subr.mxu0 0.0
    %467 = vmatpush2.msra.mxu0 0.0
    %468 = vmatprep.subr.mxu0 0.0
    %469 = vmatpush2.msra.mxu0 0.0
    %470 = vmatprep.subr.mxu0 0.0
    %471 = vmatpush2.msra.mxu0 0.0
    %472 = vmatprep.subr.mxu0 0.0
    %473 = vmatpush2.msra.mxu0 0.0
    %474 = vmatprep.subr.mxu0 0.0
    %475 = vmatpush2.msra.mxu0 0.0
    %476 = vmatprep.subr.mxu0 0.0
    %477 = vmatpush2.msra.mxu0 0.0
    %478 = vmatprep.subr.mxu0 0.0
    %479 = vmatpush2.msra.mxu0 0.0
    %480 = vmatprep.subr.mxu0 0.0
    %481 = vmatpush2.msra.mxu0 0.0
    %482 = vmatprep.subr.mxu0 0.0
    %483 = vmatpush2.msra.mxu0 0.0
    %484 = vmatprep.subr.mxu0 0.0
    %485 = vmatpush2.msra.mxu0 0.0
    %486 = vmatprep.subr.mxu0 0.0
    %487 = vmatpush2.msra.mxu0 0.0
    %488 = vmatprep.subr.mxu0 0.0
    %489 = vmatpush2.msra.mxu0 0.0
    %490 = vmatprep.mubr.f32.mxu0 0.0
    %491 = vmatmul.mubr.f32.gmra.mxu0 %v403
    %v492 = vpop.f32.mrf.mxu0
    %v493 = vadd.f32 %v399, %v492
    %v494 = vpop.f32.mrf.mxu0
    %495 = vmatprep.mubr.f32.mxu0 0.0
    %496 = vmatmul.mubr.f32.gmra.mxu0 %v406
    %v497 = vpop.f32.mrf.mxu0
    %v498 = vadd.f32 %v399, %v497
    %v499 = vpop.f32.mrf.mxu0
    %500 = vmatprep.mubr.f32.mxu0 0.0
    %501 = vmatmul.mubr.f32.gmra.mxu0 %v409
    %v502 = vpop.f32.mrf.mxu0
    %v503 = vadd.f32 %v399, %v502
    %v504 = vpop.f32.mrf.mxu0
    %505 = vmatprep.mubr.f32.mxu0 0.0
    %506 = vmatmul.mubr.f32.gmra.mxu0 %v412
    %v507 = vpop.f32.mrf.mxu0
    %v508 = vadd.f32 %v399, %v507
    %v509 = vpop.f32.mrf.mxu0
    %510 = vmatprep.mubr.f32.mxu0 0.0
    %511 = vmatmul.mubr.f32.gmra.mxu0 %v415
    %v512 = vpop.f32.mrf.mxu0
    %v513 = vadd.f32 %v399, %v512
    %v514 = vpop.f32.mrf.mxu0
    %515 = vmatprep.mubr.f32.mxu0 0.0
    %516 = vmatmul.mubr.f32.gmra.mxu0 %v418
    %v517 = vpop.f32.mrf.mxu0
    %v518 = vadd.f32 %v399, %v517
    %v519 = vpop.f32.mrf.mxu0
    %520 = vmatprep.mubr.f32.mxu0 0.0
    %521 = vmatmul.mubr.f32.gmra.mxu0 %v421
    %v522 = vpop.f32.mrf.mxu0
    %v523 = vadd.f32 %v399, %v522
    %v524 = vpop.f32.mrf.mxu0
    %525 = vmatprep.mubr.f32.mxu0 0.0
    %526 = vmatmul.mubr.f32.gmra.mxu0 %v424
    %v527 = vpop.f32.mrf.mxu0
    %v528 = vadd.f32 %v399, %v527
    %v529 = vpop.f32.mrf.mxu0
    %530 = vdwg.mxu0
    %v531 = vtanh.pop %v493
    %v532 = vtanh.pop %v498
    %v533 = vtanh.pop %v503
    %v534 = vtanh.pop %v508
    %v535 = vtanh.pop %v513
    %v536 = vtanh.pop %v518
    %v537 = vtanh.pop %v523
    %v538 = vtanh.pop %v528
    %s539 = scalar_lea.vmem %s4, 32
    %v540 = vld [vmem:[%s539] sm:$0xff]
    %v541 = vld [vmem:[%s539 + $0x8] sm:$0xff]
    %v542 = vld [vmem:[%s539 + $0x10] sm:$0xff]
    %v543 = vld [vmem:[%s539 + $0x18] sm:$0xff]
    %v545 = vsel %vm264, %v531, 0
    %v548 = vsel %vm264, %v532, 0
    %v551 = vsel %vm264, %v533, 0
    %v554 = vsel %vm264, %v534, 0
    %v557 = vsel %vm264, %v535, 0
    %v560 = vsel %vm264, %v536, 0
    %v563 = vsel %vm264, %v537, 0
    %v566 = vsel %vm264, %v538, 0
    %568 = vmatprep.subr.mxu0 0.0
    %569 = vmatpush1.msra.mxu0 0.0
    %570 = vmatprep.subr.mxu0 0.0
    %571 = vmatpush1.msra.mxu0 0.0
    %572 = vmatprep.subr.mxu0 0.0
    %573 = vmatpush1.msra.mxu0 0.0
    %574 = vmatprep.subr.mxu0 0.0
    %575 = vmatpush1.msra.mxu0 0.0
    %576 = vmatprep.subr.mxu0 0.0
    %577 = vmatpush1.msra.mxu0 0.0
    %578 = vmatprep.subr.mxu0 0.0
    %579 = vmatpush1.msra.mxu0 0.0
    %580 = vmatprep.subr.mxu0 0.0
    %581 = vmatpush1.msra.mxu0 0.0
    %582 = vmatprep.subr.mxu0 0.0
    %583 = vmatpush1.msra.mxu0 0.0
    %584 = vmatprep.subr.mxu0 0.0
    %585 = vmatpush1.msra.mxu0 0.0
    %586 = vmatprep.subr.mxu0 0.0
    %587 = vmatpush1.msra.mxu0 0.0
    %588 = vmatprep.subr.mxu0 0.0
    %589 = vmatpush1.msra.mxu0 0.0
    %590 = vmatprep.subr.mxu0 0.0
    %591 = vmatpush1.msra.mxu0 0.0
    %592 = vmatprep.subr.mxu0 0.0
    %593 = vmatpush1.msra.mxu0 %v543
    %594 = vmatprep.subr.mxu0 0.0
    %595 = vmatpush1.msra.mxu0 %v542
    %596 = vmatprep.subr.mxu0 0.0
    %597 = vmatpush1.msra.mxu0 %v541
    %598 = vmatprep.subr.mxu0 0.0
    %599 = vmatpush1.msra.mxu0 %v540
    %600 = vmatprep.subr.mxu0 0.0
    %601 = vmatpush2.msra.mxu0 0.0
    %602 = vmatprep.subr.mxu0 0.0
    %603 = vmatpush2.msra.mxu0 0.0
    %604 = vmatprep.subr.mxu0 0.0
    %605 = vmatpush2.msra.mxu0 0.0
    %606 = vmatprep.subr.mxu0 0.0
    %607 = vmatpush2.msra.mxu0 0.0
    %608 = vmatprep.subr.mxu0 0.0
    %609 = vmatpush2.msra.mxu0 0.0
    %610 = vmatprep.subr.mxu0 0.0
    %611 = vmatpush2.msra.mxu0 0.0
    %612 = vmatprep.subr.mxu0 0.0
    %613 = vmatpush2.msra.mxu0 0.0
    %614 = vmatprep.subr.mxu0 0.0
    %615 = vmatpush2.msra.mxu0 0.0
    %616 = vmatprep.subr.mxu0 0.0
    %617 = vmatpush2.msra.mxu0 0.0
    %618 = vmatprep.subr.mxu0 0.0
    %619 = vmatpush2.msra.mxu0 0.0
    %620 = vmatprep.subr.mxu0 0.0
    %621 = vmatpush2.msra.mxu0 0.0
    %622 = vmatprep.subr.mxu0 0.0
    %623 = vmatpush2.msra.mxu0 0.0
    %624 = vmatprep.subr.mxu0 0.0
    %625 = vmatpush2.msra.mxu0 0.0
    %626 = vmatprep.subr.mxu0 0.0
    %627 = vmatpush2.msra.mxu0 0.0
    %628 = vmatprep.subr.mxu0 0.0
    %629 = vmatpush2.msra.mxu0 0.0
    %630 = vmatprep.subr.mxu0 0.0
    %631 = vmatpush2.msra.mxu0 0.0
    %632 = vmatprep.mubr.f32.mxu0 0.0
    %633 = vmatmul.mubr.f32.gmra.mxu0 %v545
    %v634 = vpop.f32.mrf.mxu0
    %v635 = vadd.f32 0.0, %v634
    %v636 = vpop.f32.mrf.mxu0
    %637 = vmatprep.mubr.f32.mxu0 0.0
    %638 = vmatmul.mubr.f32.gmra.mxu0 %v548
    %v639 = vpop.f32.mrf.mxu0
    %v640 = vadd.f32 0.0, %v639
    %v641 = vpop.f32.mrf.mxu0
    %642 = vmatprep.mubr.f32.mxu0 0.0
    %643 = vmatmul.mubr.f32.gmra.mxu0 %v551
    %v644 = vpop.f32.mrf.mxu0
    %v645 = vadd.f32 0.0, %v644
    %v646 = vpop.f32.mrf.mxu0
    %647 = vmatprep.mubr.f32.mxu0 0.0
    %648 = vmatmul.mubr.f32.gmra.mxu0 %v554
    %v649 = vpop.f32.mrf.mxu0
    %v650 = vadd.f32 0.0, %v649
    %v651 = vpop.f32.mrf.mxu0
    %652 = vmatprep.mubr.f32.mxu0 0.0
    %653 = vmatmul.mubr.f32.gmra.mxu0 %v557
    %v654 = vpop.f32.mrf.mxu0
    %v655 = vadd.f32 0.0, %v654
    %v656 = vpop.f32.mrf.mxu0
    %657 = vmatprep.mubr.f32.mxu0 0.0
    %658 = vmatmul.mubr.f32.gmra.mxu0 %v560
    %v659 = vpop.f32.mrf.mxu0
    %v660 = vadd.f32 0.0, %v659
    %v661 = vpop.f32.mrf.mxu0
    %662 = vmatprep.mubr.f32.mxu0 0.0
    %663 = vmatmul.mubr.f32.gmra.mxu0 %v563
    %v664 = vpop.f32.mrf.mxu0
    %v665 = vadd.f32 0.0, %v664
    %v666 = vpop.f32.mrf.mxu0
    %667 = vmatprep.mubr.f32.mxu0 0.0
    %668 = vmatmul.mubr.f32.gmra.mxu0 %v566
    %v669 = vpop.f32.mrf.mxu0
    %v670 = vadd.f32 0.0, %v669
    %v671 = vpop.f32.mrf.mxu0
    %672 = vdwg.mxu0
    %s673 = scalar_lea.vmem [#allocation6], 1
    %v674 = vld [vmem:[%s673] sm:$0x1]
    %v676 = vlaneseq
    %v677 = vshrl.u32 %v676, 7
    %v678 = vsub.s32 0, %v677
    %v679 = vrot.slane %v674, %v678
    %681 = vmatprep.subr.mxu0 0.0
    %682 = vmatpush1.msra.mxu0 0.0
    %683 = vmatprep.subr.mxu0 0.0
    %684 = vmatpush1.msra.mxu0 0.0
    %685 = vmatprep.subr.mxu0 0.0
    %686 = vmatpush1.msra.mxu0 0.0
    %687 = vmatprep.subr.mxu0 0.0
    %688 = vmatpush1.msra.mxu0 0.0
    %689 = vmatprep.subr.mxu0 0.0
    %690 = vmatpush1.msra.mxu0 0.0
    %691 = vmatprep.subr.mxu0 0.0
    %692 = vmatpush1.msra.mxu0 0.0
    %693 = vmatprep.subr.mxu0 0.0
    %694 = vmatpush1.msra.mxu0 0.0
    %695 = vmatprep.subr.mxu0 0.0
    %696 = vmatpush1.msra.mxu0 0.0
    %697 = vmatprep.subr.mxu0 0.0
    %698 = vmatpush1.msra.mxu0 %v670
    %699 = vmatprep.subr.mxu0 0.0
    %700 = vmatpush1.msra.mxu0 %v665
    %701 = vmatprep.subr.mxu0 0.0
    %702 = vmatpush1.msra.mxu0 %v660
    %703 = vmatprep.subr.mxu0 0.0
    %704 = vmatpush1.msra.mxu0 %v655
    %705 = vmatprep.subr.mxu0 0.0
    %706 = vmatpush1.msra.mxu0 %v650
    %707 = vmatprep.subr.mxu0 0.0
    %708 = vmatpush1.msra.mxu0 %v645
    %709 = vmatprep.subr.mxu0 0.0
    %710 = vmatpush1.msra.mxu0 %v640
    %711 = vmatprep.subr.mxu0 0.0
    %712 = vmatpush1.msra.mxu0 %v635
    %713 = vmatprep.subr.mxu0 0.0
    %714 = vmatpush2.msra.mxu0 0.0
    %715 = vmatprep.subr.mxu0 0.0
    %716 = vmatpush2.msra.mxu0 0.0
    %717 = vmatprep.subr.mxu0 0.0
    %718 = vmatpush2.msra.mxu0 0.0
    %719 = vmatprep.subr.mxu0 0.0
    %720 = vmatpush2.msra.mxu0 0.0
    %721 = vmatprep.subr.mxu0 0.0
    %722 = vmatpush2.msra.mxu0 0.0
    %723 = vmatprep.subr.mxu0 0.0
    %724 = vmatpush2.msra.mxu0 0.0
    %725 = vmatprep.subr.mxu0 0.0
    %726 = vmatpush2.msra.mxu0 0.0
    %727 = vmatprep.subr.mxu0 0.0
    %728 = vmatpush2.msra.mxu0 0.0
    %729 = vmatprep.subr.mxu0 0.0
    %730 = vmatpush2.msra.mxu0 0.0
    %731 = vmatprep.subr.mxu0 0.0
    %732 = vmatpush2.msra.mxu0 0.0
    %733 = vmatprep.subr.mxu0 0.0
    %734 = vmatpush2.msra.mxu0 0.0
    %735 = vmatprep.subr.mxu0 0.0
    %736 = vmatpush2.msra.mxu0 0.0
    %737 = vmatprep.subr.mxu0 0.0
    %738 = vmatpush2.msra.mxu0 0.0
    %739 = vmatprep.subr.mxu0 0.0
    %740 = vmatpush2.msra.mxu0 0.0
    %741 = vmatprep.subr.mxu0 0.0
    %742 = vmatpush2.msra.mxu0 0.0
    %743 = vmatprep.subr.mxu0 0.0
    %744 = vmatpush2.msra.mxu0 0.0
    %745 = vmatprep.mubr.f32.mxu0 0.0
    %746 = vmatmul.mubr.f32.gmra.mxu0 %v403
    %v747 = vpop.f32.mrf.mxu0
    %v748 = vadd.f32 %v679, %v747
    %v749 = vpop.f32.mrf.mxu0
    %750 = vmatprep.mubr.f32.mxu0 0.0
    %751 = vmatmul.mubr.f32.gmra.mxu0 %v406
    %v752 = vpop.f32.mrf.mxu0
    %v753 = vadd.f32 %v679, %v752
    %v754 = vpop.f32.mrf.mxu0
    %755 = vmatprep.mubr.f32.mxu0 0.0
    %756 = vmatmul.mubr.f32.gmra.mxu0 %v409
    %v757 = vpop.f32.mrf.mxu0
    %v758 = vadd.f32 %v679, %v757
    %v759 = vpop.f32.mrf.mxu0
    %760 = vmatprep.mubr.f32.mxu0 0.0
    %761 = vmatmul.mubr.f32.gmra.mxu0 %v412
    %v762 = vpop.f32.mrf.mxu0
    %v763 = vadd.f32 %v679, %v762
    %v764 = vpop.f32.mrf.mxu0
    %765 = vmatprep.mubr.f32.mxu0 0.0
    %766 = vmatmul.mubr.f32.gmra.mxu0 %v415
    %v767 = vpop.f32.mrf.mxu0
    %v768 = vadd.f32 %v679, %v767
    %v769 = vpop.f32.mrf.mxu0
    %770 = vmatprep.mubr.f32.mxu0 0.0
    %771 = vmatmul.mubr.f32.gmra.mxu0 %v418
    %v772 = vpop.f32.mrf.mxu0
    %v773 = vadd.f32 %v679, %v772
    %v774 = vpop.f32.mrf.mxu0
    %775 = vmatprep.mubr.f32.mxu0 0.0
    %776 = vmatmul.mubr.f32.gmra.mxu0 %v421
    %v777 = vpop.f32.mrf.mxu0
    %v778 = vadd.f32 %v679, %v777
    %v779 = vpop.f32.mrf.mxu0
    %780 = vmatprep.mubr.f32.mxu0 0.0
    %781 = vmatmul.mubr.f32.gmra.mxu0 %v424
    %v782 = vpop.f32.mrf.mxu0
    %v783 = vadd.f32 %v679, %v782
    %v784 = vpop.f32.mrf.mxu0
    %785 = vdwg.mxu0
    %v786 = vtanh.pop %v748
    %v787 = vtanh.pop %v753
    %v788 = vtanh.pop %v758
    %v789 = vtanh.pop %v763
    %v790 = vtanh.pop %v768
    %v791 = vtanh.pop %v773
    %v792 = vtanh.pop %v778
    %v793 = vtanh.pop %v783
    %s794 = scalar_lea.vmem %s4, 64
    %v795 = vld [vmem:[%s794] sm:$0xff]
    %v796 = vld [vmem:[%s794 + $0x8] sm:$0xff]
    %v797 = vld [vmem:[%s794 + $0x10] sm:$0xff]
    %v798 = vld [vmem:[%s794 + $0x18] sm:$0xff]
    %v800 = vsel %vm264, %v786, 0
    %v803 = vsel %vm264, %v787, 0
    %v806 = vsel %vm264, %v788, 0
    %v809 = vsel %vm264, %v789, 0
    %v812 = vsel %vm264, %v790, 0
    %v815 = vsel %vm264, %v791, 0
    %v818 = vsel %vm264, %v792, 0
    %v821 = vsel %vm264, %v793, 0
    %823 = vmatprep.subr.mxu0 0.0
    %824 = vmatpush1.msra.mxu0 0.0
    %825 = vmatprep.subr.mxu0 0.0
    %826 = vmatpush1.msra.mxu0 0.0
    %827 = vmatprep.subr.mxu0 0.0
    %828 = vmatpush1.msra.mxu0 0.0
    %829 = vmatprep.subr.mxu0 0.0
    %830 = vmatpush1.msra.mxu0 0.0
    %831 = vmatprep.subr.mxu0 0.0
    %832 = vmatpush1.msra.mxu0 0.0
    %833 = vmatprep.subr.mxu0 0.0
    %834 = vmatpush1.msra.mxu0 0.0
    %835 = vmatprep.subr.mxu0 0.0
    %836 = vmatpush1.msra.mxu0 0.0
    %837 = vmatprep.subr.mxu0 0.0
    %838 = vmatpush1.msra.mxu0 0.0
    %839 = vmatprep.subr.mxu0 0.0
    %840 = vmatpush1.msra.mxu0 0.0
    %841 = vmatprep.subr.mxu0 0.0
    %842 = vmatpush1.msra.mxu0 0.0
    %843 = vmatprep.subr.mxu0 0.0
    %844 = vmatpush1.msra.mxu0 0.0
    %845 = vmatprep.subr.mxu0 0.0
    %846 = vmatpush1.msra.mxu0 0.0
    %847 = vmatprep.subr.mxu0 0.0
    %848 = vmatpush1.msra.mxu0 %v798
    %849 = vmatprep.subr.mxu0 0.0
    %850 = vmatpush1.msra.mxu0 %v797
    %851 = vmatprep.subr.mxu0 0.0
    %852 = vmatpush1.msra.mxu0 %v796
    %853 = vmatprep.subr.mxu0 0.0
    %854 = vmatpush1.msra.mxu0 %v795
    %855 = vmatprep.subr.mxu0 0.0
    %856 = vmatpush2.msra.mxu0 0.0
    %857 = vmatprep.subr.mxu0 0.0
    %858 = vmatpush2.msra.mxu0 0.0
    %859 = vmatprep.subr.mxu0 0.0
    %860 = vmatpush2.msra.mxu0 0.0
    %861 = vmatprep.subr.mxu0 0.0
    %862 = vmatpush2.msra.mxu0 0.0
    %863 = vmatprep.subr.mxu0 0.0
    %864 = vmatpush2.msra.mxu0 0.0
    %865 = vmatprep.subr.mxu0 0.0
    %866 = vmatpush2.msra.mxu0 0.0
    %867 = vmatprep.subr.mxu0 0.0
    %868 = vmatpush2.msra.mxu0 0.0
    %869 = vmatprep.subr.mxu0 0.0
    %870 = vmatpush2.msra.mxu0 0.0
    %871 = vmatprep.subr.mxu0 0.0
    %872 = vmatpush2.msra.mxu0 0.0
    %873 = vmatprep.subr.mxu0 0.0
    %874 = vmatpush2.msra.mxu0 0.0
    %875 = vmatprep.subr.mxu0 0.0
    %876 = vmatpush2.msra.mxu0 0.0
    %877 = vmatprep.subr.mxu0 0.0
    %878 = vmatpush2.msra.mxu0 0.0
    %879 = vmatprep.subr.mxu0 0.0
    %880 = vmatpush2.msra.mxu0 0.0
    %881 = vmatprep.subr.mxu0 0.0
    %882 = vmatpush2.msra.mxu0 0.0
    %883 = vmatprep.subr.mxu0 0.0
    %884 = vmatpush2.msra.mxu0 0.0
    %885 = vmatprep.subr.mxu0 0.0
    %886 = vmatpush2.msra.mxu0 0.0
    %887 = vmatprep.mubr.f32.mxu0 0.0
    %888 = vmatmul.mubr.f32.gmra.mxu0 %v800
    %v889 = vpop.f32.mrf.mxu0
    %v890 = vadd.f32 0.0, %v889
    %v891 = vpop.f32.mrf.mxu0
    %892 = vmatprep.mubr.f32.mxu0 0.0
    %893 = vmatmul.mubr.f32.gmra.mxu0 %v803
    %v894 = vpop.f32.mrf.mxu0
    %v895 = vadd.f32 0.0, %v894
    %v896 = vpop.f32.mrf.mxu0
    %897 = vmatprep.mubr.f32.mxu0 0.0
    %898 = vmatmul.mubr.f32.gmra.mxu0 %v806
    %v899 = vpop.f32.mrf.mxu0
    %v900 = vadd.f32 0.0, %v899
    %v901 = vpop.f32.mrf.mxu0
    %902 = vmatprep.mubr.f32.mxu0 0.0
    %903 = vmatmul.mubr.f32.gmra.mxu0 %v809
    %v904 = vpop.f32.mrf.mxu0
    %v905 = vadd.f32 0.0, %v904
    %v906 = vpop.f32.mrf.mxu0
    %907 = vmatprep.mubr.f32.mxu0 0.0
    %908 = vmatmul.mubr.f32.gmra.mxu0 %v812
    %v909 = vpop.f32.mrf.mxu0
    %v910 = vadd.f32 0.0, %v909
    %v911 = vpop.f32.mrf.mxu0
    %912 = vmatprep.mubr.f32.mxu0 0.0
    %913 = vmatmul.mubr.f32.gmra.mxu0 %v815
    %v914 = vpop.f32.mrf.mxu0
    %v915 = vadd.f32 0.0, %v914
    %v916 = vpop.f32.mrf.mxu0
    %917 = vmatprep.mubr.f32.mxu0 0.0
    %918 = vmatmul.mubr.f32.gmra.mxu0 %v818
    %v919 = vpop.f32.mrf.mxu0
    %v920 = vadd.f32 0.0, %v919
    %v921 = vpop.f32.mrf.mxu0
    %922 = vmatprep.mubr.f32.mxu0 0.0
    %923 = vmatmul.mubr.f32.gmra.mxu0 %v821
    %v924 = vpop.f32.mrf.mxu0
    %v925 = vadd.f32 0.0, %v924
    %v926 = vpop.f32.mrf.mxu0
    %927 = vdwg.mxu0
    %s928 = scalar_lea.vmem [#allocation6], 2
    %v929 = vld [vmem:[%s928] sm:$0x1]
    %v931 = vlaneseq
    %v932 = vshrl.u32 %v931, 7
    %v933 = vsub.s32 0, %v932
    %v934 = vrot.slane %v929, %v933
    %936 = vmatprep.subr.mxu0 0.0
    %937 = vmatpush1.msra.mxu0 0.0
    %938 = vmatprep.subr.mxu0 0.0
    %939 = vmatpush1.msra.mxu0 0.0
    %940 = vmatprep.subr.mxu0 0.0
    %941 = vmatpush1.msra.mxu0 0.0
    %942 = vmatprep.subr.mxu0 0.0
    %943 = vmatpush1.msra.mxu0 0.0
    %944 = vmatprep.subr.mxu0 0.0
    %945 = vmatpush1.msra.mxu0 0.0
    %946 = vmatprep.subr.mxu0 0.0
    %947 = vmatpush1.msra.mxu0 0.0
    %948 = vmatprep.subr.mxu0 0.0
    %949 = vmatpush1.msra.mxu0 0.0
    %950 = vmatprep.subr.mxu0 0.0
    %951 = vmatpush1.msra.mxu0 0.0
    %952 = vmatprep.subr.mxu0 0.0
    %953 = vmatpush1.msra.mxu0 %v925
    %954 = vmatprep.subr.mxu0 0.0
    %955 = vmatpush1.msra.mxu0 %v920
    %956 = vmatprep.subr.mxu0 0.0
    %957 = vmatpush1.msra.mxu0 %v915
    %958 = vmatprep.subr.mxu0 0.0
    %959 = vmatpush1.msra.mxu0 %v910
    %960 = vmatprep.subr.mxu0 0.0
    %961 = vmatpush1.msra.mxu0 %v905
    %962 = vmatprep.subr.mxu0 0.0
    %963 = vmatpush1.msra.mxu0 %v900
    %964 = vmatprep.subr.mxu0 0.0
    %965 = vmatpush1.msra.mxu0 %v895
    %966 = vmatprep.subr.mxu0 0.0
    %967 = vmatpush1.msra.mxu0 %v890
    %968 = vmatprep.subr.mxu0 0.0
    %969 = vmatpush2.msra.mxu0 0.0
    %970 = vmatprep.subr.mxu0 0.0
    %971 = vmatpush2.msra.mxu0 0.0
    %972 = vmatprep.subr.mxu0 0.0
    %973 = vmatpush2.msra.mxu0 0.0
    %974 = vmatprep.subr.mxu0 0.0
    %975 = vmatpush2.msra.mxu0 0.0
    %976 = vmatprep.subr.mxu0 0.0
    %977 = vmatpush2.msra.mxu0 0.0
    %978 = vmatprep.subr.mxu0 0.0
    %979 = vmatpush2.msra.mxu0 0.0
    %980 = vmatprep.subr.mxu0 0.0
    %981 = vmatpush2.msra.mxu0 0.0
    %982 = vmatprep.subr.mxu0 0.0
    %983 = vmatpush2.msra.mxu0 0.0
    %984 = vmatprep.subr.mxu0 0.0
    %985 = vmatpush2.msra.mxu0 0.0
    %986 = vmatprep.subr.mxu0 0.0
    %987 = vmatpush2.msra.mxu0 0.0
    %988 = vmatprep.subr.mxu0 0.0
    %989 = vmatpush2.msra.mxu0 0.0
    %990 = vmatprep.subr.mxu0 0.0
    %991 = vmatpush2.msra.mxu0 0.0
    %992 = vmatprep.subr.mxu0 0.0
    %993 = vmatpush2.msra.mxu0 0.0
    %994 = vmatprep.subr.mxu0 0.0
    %995 = vmatpush2.msra.mxu0 0.0
    %996 = vmatprep.subr.mxu0 0.0
    %997 = vmatpush2.msra.mxu0 0.0
    %998 = vmatprep.subr.mxu0 0.0
    %999 = vmatpush2.msra.mxu0 0.0
    %1000 = vmatprep.mubr.f32.mxu0 0.0
    %1001 = vmatmul.mubr.f32.gmra.mxu0 %v403
    %v1002 = vpop.f32.mrf.mxu0
    %v1003 = vadd.f32 %v934, %v1002
    %v1004 = vpop.f32.mrf.mxu0
    %1005 = vmatprep.mubr.f32.mxu0 0.0
    %1006 = vmatmul.mubr.f32.gmra.mxu0 %v406
    %v1007 = vpop.f32.mrf.mxu0
    %v1008 = vadd.f32 %v934, %v1007
    %v1009 = vpop.f32.mrf.mxu0
    %1010 = vmatprep.mubr.f32.mxu0 0.0
    %1011 = vmatmul.mubr.f32.gmra.mxu0 %v409
    %v1012 = vpop.f32.mrf.mxu0
    %v1013 = vadd.f32 %v934, %v1012
    %v1014 = vpop.f32.mrf.mxu0
    %1015 = vmatprep.mubr.f32.mxu0 0.0
    %1016 = vmatmul.mubr.f32.gmra.mxu0 %v412
    %v1017 = vpop.f32.mrf.mxu0
    %v1018 = vadd.f32 %v934, %v1017
    %v1019 = vpop.f32.mrf.mxu0
    %1020 = vmatprep.mubr.f32.mxu0 0.0
    %1021 = vmatmul.mubr.f32.gmra.mxu0 %v415
    %v1022 = vpop.f32.mrf.mxu0
    %v1023 = vadd.f32 %v934, %v1022
    %v1024 = vpop.f32.mrf.mxu0
    %1025 = vmatprep.mubr.f32.mxu0 0.0
    %1026 = vmatmul.mubr.f32.gmra.mxu0 %v418
    %v1027 = vpop.f32.mrf.mxu0
    %v1028 = vadd.f32 %v934, %v1027
    %v1029 = vpop.f32.mrf.mxu0
    %1030 = vmatprep.mubr.f32.mxu0 0.0
    %1031 = vmatmul.mubr.f32.gmra.mxu0 %v421
    %v1032 = vpop.f32.mrf.mxu0
    %v1033 = vadd.f32 %v934, %v1032
    %v1034 = vpop.f32.mrf.mxu0
    %1035 = vmatprep.mubr.f32.mxu0 0.0
    %1036 = vmatmul.mubr.f32.gmra.mxu0 %v424
    %v1037 = vpop.f32.mrf.mxu0
    %v1038 = vadd.f32 %v934, %v1037
    %v1039 = vpop.f32.mrf.mxu0
    %1040 = vdwg.mxu0
    %v1041 = vtanh.pop %v1003
    %v1042 = vtanh.pop %v1008
    %v1043 = vtanh.pop %v1013
    %v1044 = vtanh.pop %v1018
    %v1045 = vtanh.pop %v1023
    %v1046 = vtanh.pop %v1028
    %v1047 = vtanh.pop %v1033
    %v1048 = vtanh.pop %v1038
    %v1049 = vmul.f32 %v214, %v531
    %v1050 = vmul.f32 %v219, %v532
    %v1051 = vmul.f32 %v224, %v533
    %v1052 = vmul.f32 %v229, %v534
    %v1053 = vmul.f32 %v234, %v535
    %v1054 = vmul.f32 %v239, %v536
    %v1055 = vmul.f32 %v244, %v537
    %v1056 = vmul.f32 %v249, %v538
    %v1057 = vsel %vm264, %v1049, 0.0
    %1058 = vadd.xlane.f32.xlu0 %v1057
    %v1059 = vpop.xlane.xlu0 %1058
    %v1060 = vsel %vm264, %v1050, 0.0
    %1061 = vadd.xlane.f32.xlu0 %v1060
    %v1062 = vpop.xlane.xlu0 %1061
    %v1063 = vsel %vm264, %v1051, 0.0
    %1064 = vadd.xlane.f32.xlu0 %v1063
    %v1065 = vpop.xlane.xlu0 %1064
    %v1066 = vsel %vm264, %v1052, 0.0
    %1067 = vadd.xlane.f32.xlu0 %v1066
    %v1068 = vpop.xlane.xlu0 %1067
    %v1069 = vsel %vm264, %v1053, 0.0
    %1070 = vadd.xlane.f32.xlu0 %v1069
    %v1071 = vpop.xlane.xlu0 %1070
    %v1072 = vsel %vm264, %v1054, 0.0
    %1073 = vadd.xlane.f32.xlu0 %v1072
    %v1074 = vpop.xlane.xlu0 %1073
    %v1075 = vsel %vm264, %v1055, 0.0
    %1076 = vadd.xlane.f32.xlu0 %v1075
    %v1077 = vpop.xlane.xlu0 %1076
    %v1078 = vsel %vm264, %v1056, 0.0
    %1079 = vadd.xlane.f32.xlu0 %v1078
    %v1080 = vpop.xlane.xlu0 %1079
    %v1081 = vmul.f32 %v1059, 0.17677669
    %v1082 = vmul.f32 %v1062, 0.17677669
    %v1083 = vmul.f32 %v1065, 0.17677669
    %v1084 = vmul.f32 %v1068, 0.17677669
    %v1085 = vmul.f32 %v1071, 0.17677669
    %v1086 = vmul.f32 %v1074, 0.17677669
    %v1087 = vmul.f32 %v1077, 0.17677669
    %v1088 = vmul.f32 %v1080, 0.17677669
    %v1089 = vmul.f32 %v214, %v786
    %v1090 = vmul.f32 %v219, %v787
    %v1091 = vmul.f32 %v224, %v788
    %v1092 = vmul.f32 %v229, %v789
    %v1093 = vmul.f32 %v234, %v790
    %v1094 = vmul.f32 %v239, %v791
    %v1095 = vmul.f32 %v244, %v792
    %v1096 = vmul.f32 %v249, %v793
    %v1097 = vsel %vm264, %v1089, 0.0
    %1098 = vadd.xlane.f32.xlu0 %v1097
    %v1099 = vpop.xlane.xlu0 %1098
    %v1100 = vsel %vm264, %v1090, 0.0
    %1101 = vadd.xlane.f32.xlu0 %v1100
    %v1102 = vpop.xlane.xlu0 %1101
    %v1103 = vsel %vm264, %v1091, 0.0
    %1104 = vadd.xlane.f32.xlu0 %v1103
    %v1105 = vpop.xlane.xlu0 %1104
    %v1106 = vsel %vm264, %v1092, 0.0
    %1107 = vadd.xlane.f32.xlu0 %v1106
    %v1108 = vpop.xlane.xlu0 %1107
    %v1109 = vsel %vm264, %v1093, 0.0
    %1110 = vadd.xlane.f32.xlu0 %v1109
    %v1111 = vpop.xlane.xlu0 %1110
    %v1112 = vsel %vm264, %v1094, 0.0
    %1113 = vadd.xlane.f32.xlu0 %v1112
    %v1114 = vpop.xlane.xlu0 %1113
    %v1115 = vsel %vm264, %v1095, 0.0
    %1116 = vadd.xlane.f32.xlu0 %v1115
    %v1117 = vpop.xlane.xlu0 %1116
    %v1118 = vsel %vm264, %v1096, 0.0
    %1119 = vadd.xlane.f32.xlu0 %v1118
    %v1120 = vpop.xlane.xlu0 %1119
    %v1121 = vmul.f32 %v1099, 0.17677669
    %v1122 = vmul.f32 %v1102, 0.17677669
    %v1123 = vmul.f32 %v1105, 0.17677669
    %v1124 = vmul.f32 %v1108, 0.17677669
    %v1125 = vmul.f32 %v1111, 0.17677669
    %v1126 = vmul.f32 %v1114, 0.17677669
    %v1127 = vmul.f32 %v1117, 0.17677669
    %v1128 = vmul.f32 %v1120, 0.17677669
    %v1129 = vmul.f32 %v214, %v1041
    %v1130 = vmul.f32 %v219, %v1042
    %v1131 = vmul.f32 %v224, %v1043
    %v1132 = vmul.f32 %v229, %v1044
    %v1133 = vmul.f32 %v234, %v1045
    %v1134 = vmul.f32 %v239, %v1046
    %v1135 = vmul.f32 %v244, %v1047
    %v1136 = vmul.f32 %v249, %v1048
    %v1137 = vsel %vm264, %v1129, 0.0
    %1138 = vadd.xlane.f32.xlu0 %v1137
    %v1139 = vpop.xlane.xlu0 %1138
    %v1140 = vsel %vm264, %v1130, 0.0
    %1141 = vadd.xlane.f32.xlu0 %v1140
    %v1142 = vpop.xlane.xlu0 %1141
    %v1143 = vsel %vm264, %v1131, 0.0
    %1144 = vadd.xlane.f32.xlu0 %v1143
    %v1145 = vpop.xlane.xlu0 %1144
    %v1146 = vsel %vm264, %v1132, 0.0
    %1147 = vadd.xlane.f32.xlu0 %v1146
    %v1148 = vpop.xlane.xlu0 %1147
    %v1149 = vsel %vm264, %v1133, 0.0
    %1150 = vadd.xlane.f32.xlu0 %v1149
    %v1151 = vpop.xlane.xlu0 %1150
    %v1152 = vsel %vm264, %v1134, 0.0
    %1153 = vadd.xlane.f32.xlu0 %v1152
    %v1154 = vpop.xlane.xlu0 %1153
    %v1155 = vsel %vm264, %v1135, 0.0
    %1156 = vadd.xlane.f32.xlu0 %v1155
    %v1157 = vpop.xlane.xlu0 %1156
    %v1158 = vsel %vm264, %v1136, 0.0
    %1159 = vadd.xlane.f32.xlu0 %v1158
    %v1160 = vpop.xlane.xlu0 %1159
    %v1161 = vmul.f32 %v1139, 0.17677669
    %v1162 = vmul.f32 %v1142, 0.17677669
    %v1163 = vmul.f32 %v1145, 0.17677669
    %v1164 = vmul.f32 %v1148, 0.17677669
    %v1165 = vmul.f32 %v1151, 0.17677669
    %v1166 = vmul.f32 %v1154, 0.17677669
    %v1167 = vmul.f32 %v1157, 0.17677669
    %v1168 = vmul.f32 %v1160, 0.17677669
    %v1169 = vmax.f32 %v1081, %v1121
    %v1170 = vmax.f32 %v1082, %v1122
    %v1171 = vmax.f32 %v1083, %v1123
    %v1172 = vmax.f32 %v1084, %v1124
    %v1173 = vmax.f32 %v1085, %v1125
    %v1174 = vmax.f32 %v1086, %v1126
    %v1175 = vmax.f32 %v1087, %v1127
    %v1176 = vmax.f32 %v1088, %v1128
    %v1177 = vmax.f32 %v1169, %v1161
    %v1178 = vmax.f32 %v1170, %v1162
    %v1179 = vmax.f32 %v1171, %v1163
    %v1180 = vmax.f32 %v1172, %v1164
    %v1181 = vmax.f32 %v1173, %v1165
    %v1182 = vmax.f32 %v1174, %v1166
    %v1183 = vmax.f32 %v1175, %v1167
    %v1184 = vmax.f32 %v1176, %v1168
    %v1185 = vsub.f32 %v1081, %v1177
    %v1186 = vsub.f32 %v1082, %v1178
    %v1187 = vsub.f32 %v1083, %v1179
    %v1188 = vsub.f32 %v1084, %v1180
    %v1189 = vsub.f32 %v1085, %v1181
    %v1190 = vsub.f32 %v1086, %v1182
    %v1191 = vsub.f32 %v1087, %v1183
    %v1192 = vsub.f32 %v1088, %v1184
    %v1193 = vmul.f32 %v1185, 1.442695
    %v1194 = vpow.pop %v1193
    %v1195 = vmul.f32 %v1186, 1.442695
    %v1196 = vpow.pop %v1195
    %v1197 = vmul.f32 %v1187, 1.442695
    %v1198 = vpow.pop %v1197
    %v1199 = vmul.f32 %v1188, 1.442695
    %v1200 = vpow.pop %v1199
    %v1201 = vmul.f32 %v1189, 1.442695
    %v1202 = vpow.pop %v1201
    %v1203 = vmul.f32 %v1190, 1.442695
    %v1204 = vpow.pop %v1203
    %v1205 = vmul.f32 %v1191, 1.442695
    %v1206 = vpow.pop %v1205
    %v1207 = vmul.f32 %v1192, 1.442695
    %v1208 = vpow.pop %v1207
    %v1209 = vsub.f32 %v1121, %v1177
    %v1210 = vsub.f32 %v1122, %v1178
    %v1211 = vsub.f32 %v1123, %v1179
    %v1212 = vsub.f32 %v1124, %v1180
    %v1213 = vsub.f32 %v1125, %v1181
    %v1214 = vsub.f32 %v1126, %v1182
    %v1215 = vsub.f32 %v1127, %v1183
    %v1216 = vsub.f32 %v1128, %v1184
    %v1217 = vmul.f32 %v1209, 1.442695
    %v1218 = vpow.pop %v1217
    %v1219 = vmul.f32 %v1210, 1.442695
    %v1220 = vpow.pop %v1219
    %v1221 = vmul.f32 %v1211, 1.442695
    %v1222 = vpow.pop %v1221
    %v1223 = vmul.f32 %v1212, 1.442695
    %v1224 = vpow.pop %v1223
    %v1225 = vmul.f32 %v1213, 1.442695
    %v1226 = vpow.pop %v1225
    %v1227 = vmul.f32 %v1214, 1.442695
    %v1228 = vpow.pop %v1227
    %v1229 = vmul.f32 %v1215, 1.442695
    %v1230 = vpow.pop %v1229
    %v1231 = vmul.f32 %v1216, 1.442695
    %v1232 = vpow.pop %v1231
    %v1233 = vsub.f32 %v1161, %v1177
    %v1234 = vsub.f32 %v1162, %v1178
    %v1235 = vsub.f32 %v1163, %v1179
    %v1236 = vsub.f32 %v1164, %v1180
    %v1237 = vsub.f32 %v1165, %v1181
    %v1238 = vsub.f32 %v1166, %v1182
    %v1239 = vsub.f32 %v1167, %v1183
    %v1240 = vsub.f32 %v1168, %v1184
    %v1241 = vmul.f32 %v1233, 1.442695
    %v1242 = vpow.pop %v1241
    %v1243 = vmul.f32 %v1234, 1.442695
    %v1244 = vpow.pop %v1243
    %v1245 = vmul.f32 %v1235, 1.442695
    %v1246 = vpow.pop %v1245
    %v1247 = vmul.f32 %v1236, 1.442695
    %v1248 = vpow.pop %v1247
    %v1249 = vmul.f32 %v1237, 1.442695
    %v1250 = vpow.pop %v1249
    %v1251 = vmul.f32 %v1238, 1.442695
    %v1252 = vpow.pop %v1251
    %v1253 = vmul.f32 %v1239, 1.442695
    %v1254 = vpow.pop %v1253
    %v1255 = vmul.f32 %v1240, 1.442695
    %v1256 = vpow.pop %v1255
    %v1257 = vadd.f32 %v1194, %v1218
    %v1258 = vadd.f32 %v1196, %v1220
    %v1259 = vadd.f32 %v1198, %v1222
    %v1260 = vadd.f32 %v1200, %v1224
    %v1261 = vadd.f32 %v1202, %v1226
    %v1262 = vadd.f32 %v1204, %v1228
    %v1263 = vadd.f32 %v1206, %v1230
    %v1264 = vadd.f32 %v1208, %v1232
    %v1265 = vadd.f32 %v1257, %v1242
    %v1266 = vadd.f32 %v1258, %v1244
    %v1267 = vadd.f32 %v1259, %v1246
    %v1268 = vadd.f32 %v1260, %v1248
    %v1269 = vadd.f32 %v1261, %v1250
    %v1270 = vadd.f32 %v1262, %v1252
    %v1271 = vadd.f32 %v1263, %v1254
    %v1272 = vadd.f32 %v1264, %v1256
    %v1273 = vrcp.pop %v1265
    %v1274 = vmul.f32 1.0, %v1273
    %v1275 = vrcp.pop %v1266
    %v1276 = vmul.f32 1.0, %v1275
    %v1277 = vrcp.pop %v1267
    %v1278 = vmul.f32 1.0, %v1277
    %v1279 = vrcp.pop %v1268
    %v1280 = vmul.f32 1.0, %v1279
    %v1281 = vrcp.pop %v1269
    %v1282 = vmul.f32 1.0, %v1281
    %v1283 = vrcp.pop %v1270
    %v1284 = vmul.f32 1.0, %v1283
    %v1285 = vrcp.pop %v1271
    %v1286 = vmul.f32 1.0, %v1285
    %v1287 = vrcp.pop %v1272
    %v1288 = vmul.f32 1.0, %v1287
    %v1289 = vmul.f32 %v1194, %v1274
    %v1290 = vmul.f32 %v1196, %v1276
    %v1291 = vmul.f32 %v1198, %v1278
    %v1292 = vmul.f32 %v1200, %v1280
    %v1293 = vmul.f32 %v1202, %v1282
    %v1294 = vmul.f32 %v1204, %v1284
    %v1295 = vmul.f32 %v1206, %v1286
    %v1296 = vmul.f32 %v1208, %v1288
    %vm1297 = vcmask 7168
    %1298 = vst.msk [vmem:[%s13] sm:$0xff] %vm1297, %v1289
    %1299 = vst.msk [vmem:[%s13 + $0x8] sm:$0xff] %vm1297, %v1290
    %1300 = vst.msk [vmem:[%s13 + $0x10] sm:$0xff] %vm1297, %v1291
    %1301 = vst.msk [vmem:[%s13 + $0x18] sm:$0xff] %vm1297, %v1292
    %1302 = vst.msk [vmem:[%s13 + $0x20] sm:$0xff] %vm1297, %v1293
    %1303 = vst.msk [vmem:[%s13 + $0x28] sm:$0xff] %vm1297, %v1294
    %1304 = vst.msk [vmem:[%s13 + $0x30] sm:$0xff] %vm1297, %v1295
    %1305 = vst.msk [vmem:[%s13 + $0x38] sm:$0xff] %vm1297, %v1296
    %v1306 = vmul.f32 %v1289, %v531
    %v1307 = vmul.f32 %v1290, %v532
    %v1308 = vmul.f32 %v1291, %v533
    %v1309 = vmul.f32 %v1292, %v534
    %v1310 = vmul.f32 %v1293, %v535
    %v1311 = vmul.f32 %v1294, %v536
    %v1312 = vmul.f32 %v1295, %v537
    %v1313 = vmul.f32 %v1296, %v538
    %v1314 = vmul.f32 %v1218, %v1274
    %v1315 = vmul.f32 %v1220, %v1276
    %v1316 = vmul.f32 %v1222, %v1278
    %v1317 = vmul.f32 %v1224, %v1280
    %v1318 = vmul.f32 %v1226, %v1282
    %v1319 = vmul.f32 %v1228, %v1284
    %v1320 = vmul.f32 %v1230, %v1286
    %v1321 = vmul.f32 %v1232, %v1288
    %vm1322 = vcmask 15368
    %1323 = vst.msk [vmem:[%s13] sm:$0xff] %vm1322, %v1314
    %1324 = vst.msk [vmem:[%s13 + $0x8] sm:$0xff] %vm1322, %v1315
    %1325 = vst.msk [vmem:[%s13 + $0x10] sm:$0xff] %vm1322, %v1316
    %1326 = vst.msk [vmem:[%s13 + $0x18] sm:$0xff] %vm1322, %v1317
    %1327 = vst.msk [vmem:[%s13 + $0x20] sm:$0xff] %vm1322, %v1318
    %1328 = vst.msk [vmem:[%s13 + $0x28] sm:$0xff] %vm1322, %v1319
    %1329 = vst.msk [vmem:[%s13 + $0x30] sm:$0xff] %vm1322, %v1320
    %1330 = vst.msk [vmem:[%s13 + $0x38] sm:$0xff] %vm1322, %v1321
    %v1331 = vmul.f32 %v1314, %v786
    %v1332 = vmul.f32 %v1315, %v787
    %v1333 = vmul.f32 %v1316, %v788
    %v1334 = vmul.f32 %v1317, %v789
    %v1335 = vmul.f32 %v1318, %v790
    %v1336 = vmul.f32 %v1319, %v791
    %v1337 = vmul.f32 %v1320, %v792
    %v1338 = vmul.f32 %v1321, %v793
    %v1339 = vadd.f32 %v1306, %v1331
    %v1340 = vadd.f32 %v1307, %v1332
    %v1341 = vadd.f32 %v1308, %v1333
    %v1342 = vadd.f32 %v1309, %v1334
    %v1343 = vadd.f32 %v1310, %v1335
    %v1344 = vadd.f32 %v1311, %v1336
    %v1345 = vadd.f32 %v1312, %v1337
    %v1346 = vadd.f32 %v1313, %v1338
    %v1347 = vmul.f32 %v1242, %v1274
    %v1348 = vmul.f32 %v1244, %v1276
    %v1349 = vmul.f32 %v1246, %v1278
    %v1350 = vmul.f32 %v1248, %v1280
    %v1351 = vmul.f32 %v1250, %v1282
    %v1352 = vmul.f32 %v1252, %v1284
    %v1353 = vmul.f32 %v1254, %v1286
    %v1354 = vmul.f32 %v1256, %v1288
    %vm1355 = vcmask 23568
    %1356 = vst.msk [vmem:[%s13] sm:$0xff] %vm1355, %v1347
    %1357 = vst.msk [vmem:[%s13 + $0x8] sm:$0xff] %vm1355, %v1348
    %1358 = vst.msk [vmem:[%s13 + $0x10] sm:$0xff] %vm1355, %v1349
    %1359 = vst.msk [vmem:[%s13 + $0x18] sm:$0xff] %vm1355, %v1350
    %1360 = vst.msk [vmem:[%s13 + $0x20] sm:$0xff] %vm1355, %v1351
    %1361 = vst.msk [vmem:[%s13 + $0x28] sm:$0xff] %vm1355, %v1352
    %1362 = vst.msk [vmem:[%s13 + $0x30] sm:$0xff] %vm1355, %v1353
    %1363 = vst.msk [vmem:[%s13 + $0x38] sm:$0xff] %vm1355, %v1354
    %v1364 = vmul.f32 %v1347, %v1041
    %v1365 = vmul.f32 %v1348, %v1042
    %v1366 = vmul.f32 %v1349, %v1043
    %v1367 = vmul.f32 %v1350, %v1044
    %v1368 = vmul.f32 %v1351, %v1045
    %v1369 = vmul.f32 %v1352, %v1046
    %v1370 = vmul.f32 %v1353, %v1047
    %v1371 = vmul.f32 %v1354, %v1048
    %v1372 = vadd.f32 %v1339, %v1364
    %v1373 = vadd.f32 %v1340, %v1365
    %v1374 = vadd.f32 %v1341, %v1366
    %v1375 = vadd.f32 %v1342, %v1367
    %v1376 = vadd.f32 %v1343, %v1368
    %v1377 = vadd.f32 %v1344, %v1369
    %v1378 = vadd.f32 %v1345, %v1370
    %v1379 = vadd.f32 %v1346, %v1371
    %v1380 = vld [vmem:[%s6] sm:$0xff]
    %v1381 = vld [vmem:[%s6 + $0x8] sm:$0xff]
    %v1382 = vld [vmem:[%s6 + $0x10] sm:$0xff]
    %v1383 = vld [vmem:[%s6 + $0x18] sm:$0xff]
    %v1384 = vld [vmem:[#allocation7] sm:$0x1]
    %v1386 = vlaneseq
    %v1387 = vshrl.u32 %v1386, 7
    %v1388 = vsub.s32 0, %v1387
    %v1389 = vrot.slane %v1384, %v1388
    %v1392 = vsel %vm264, %v1372, 0
    %v1395 = vsel %vm264, %v1373, 0
    %v1398 = vsel %vm264, %v1374, 0
    %v1401 = vsel %vm264, %v1375, 0
    %v1404 = vsel %vm264, %v1376, 0
    %v1407 = vsel %vm264, %v1377, 0
    %v1410 = vsel %vm264, %v1378, 0
    %v1413 = vsel %vm264, %v1379, 0
    %1415 = vmatprep.subr.mxu0 0.0
    %1416 = vmatpush1.msra.mxu0 0.0
    %1417 = vmatprep.subr.mxu0 0.0
    %1418 = vmatpush1.msra.mxu0 0.0
    %1419 = vmatprep.subr.mxu0 0.0
    %1420 = vmatpush1.msra.mxu0 0.0
    %1421 = vmatprep.subr.mxu0 0.0
    %1422 = vmatpush1.msra.mxu0 0.0
    %1423 = vmatprep.subr.mxu0 0.0
    %1424 = vmatpush1.msra.mxu0 0.0
    %1425 = vmatprep.subr.mxu0 0.0
    %1426 = vmatpush1.msra.mxu0 0.0
    %1427 = vmatprep.subr.mxu0 0.0
    %1428 = vmatpush1.msra.mxu0 0.0
    %1429 = vmatprep.subr.mxu0 0.0
    %1430 = vmatpush1.msra.mxu0 0.0
    %1431 = vmatprep.subr.mxu0 0.0
    %1432 = vmatpush1.msra.mxu0 0.0
    %1433 = vmatprep.subr.mxu0 0.0
    %1434 = vmatpush1.msra.mxu0 0.0
    %1435 = vmatprep.subr.mxu0 0.0
    %1436 = vmatpush1.msra.mxu0 0.0
    %1437 = vmatprep.subr.mxu0 0.0
    %1438 = vmatpush1.msra.mxu0 0.0
    %1439 = vmatprep.subr.mxu0 0.0
    %1440 = vmatpush1.msra.mxu0 %v1383
    %1441 = vmatprep.subr.mxu0 0.0
    %1442 = vmatpush1.msra.mxu0 %v1382
    %1443 = vmatprep.subr.mxu0 0.0
    %1444 = vmatpush1.msra.mxu0 %v1381
    %1445 = vmatprep.subr.mxu0 0.0
    %1446 = vmatpush1.msra.mxu0 %v1380
    %1447 = vmatprep.subr.mxu0 0.0
    %1448 = vmatpush2.msra.mxu0 0.0
    %1449 = vmatprep.subr.mxu0 0.0
    %1450 = vmatpush2.msra.mxu0 0.0
    %1451 = vmatprep.subr.mxu0 0.0
    %1452 = vmatpush2.msra.mxu0 0.0
    %1453 = vmatprep.subr.mxu0 0.0
    %1454 = vmatpush2.msra.mxu0 0.0
    %1455 = vmatprep.subr.mxu0 0.0
    %1456 = vmatpush2.msra.mxu0 0.0
    %1457 = vmatprep.subr.mxu0 0.0
    %1458 = vmatpush2.msra.mxu0 0.0
    %1459 = vmatprep.subr.mxu0 0.0
    %1460 = vmatpush2.msra.mxu0 0.0
    %1461 = vmatprep.subr.mxu0 0.0
    %1462 = vmatpush2.msra.mxu0 0.0
    %1463 = vmatprep.subr.mxu0 0.0
    %1464 = vmatpush2.msra.mxu0 0.0
    %1465 = vmatprep.subr.mxu0 0.0
    %1466 = vmatpush2.msra.mxu0 0.0
    %1467 = vmatprep.subr.mxu0 0.0
    %1468 = vmatpush2.msra.mxu0 0.0
    %1469 = vmatprep.subr.mxu0 0.0
    %1470 = vmatpush2.msra.mxu0 0.0
    %1471 = vmatprep.subr.mxu0 0.0
    %1472 = vmatpush2.msra.mxu0 0.0
    %1473 = vmatprep.subr.mxu0 0.0
    %1474 = vmatpush2.msra.mxu0 0.0
    %1475 = vmatprep.subr.mxu0 0.0
    %1476 = vmatpush2.msra.mxu0 0.0
    %1477 = vmatprep.subr.mxu0 0.0
    %1478 = vmatpush2.msra.mxu0 0.0
    %1479 = vmatprep.mubr.f32.mxu0 0.0
    %1480 = vmatmul.mubr.f32.gmra.mxu0 %v1392
    %v1481 = vpop.f32.mrf.mxu0
    %v1482 = vadd.f32 %v1389, %v1481
    %v1483 = vpop.f32.mrf.mxu0
    %1484 = vmatprep.mubr.f32.mxu0 0.0
    %1485 = vmatmul.mubr.f32.gmra.mxu0 %v1395
    %v1486 = vpop.f32.mrf.mxu0
    %v1487 = vadd.f32 %v1389, %v1486
    %v1488 = vpop.f32.mrf.mxu0
    %1489 = vmatprep.mubr.f32.mxu0 0.0
    %1490 = vmatmul.mubr.f32.gmra.mxu0 %v1398
    %v1491 = vpop.f32.mrf.mxu0
    %v1492 = vadd.f32 %v1389, %v1491
    %v1493 = vpop.f32.mrf.mxu0
    %1494 = vmatprep.mubr.f32.mxu0 0.0
    %1495 = vmatmul.mubr.f32.gmra.mxu0 %v1401
    %v1496 = vpop.f32.mrf.mxu0
    %v1497 = vadd.f32 %v1389, %v1496
    %v1498 = vpop.f32.mrf.mxu0
    %1499 = vmatprep.mubr.f32.mxu0 0.0
    %1500 = vmatmul.mubr.f32.gmra.mxu0 %v1404
    %v1501 = vpop.f32.mrf.mxu0
    %v1502 = vadd.f32 %v1389, %v1501
    %v1503 = vpop.f32.mrf.mxu0
    %1504 = vmatprep.mubr.f32.mxu0 0.0
    %1505 = vmatmul.mubr.f32.gmra.mxu0 %v1407
    %v1506 = vpop.f32.mrf.mxu0
    %v1507 = vadd.f32 %v1389, %v1506
    %v1508 = vpop.f32.mrf.mxu0
    %1509 = vmatprep.mubr.f32.mxu0 0.0
    %1510 = vmatmul.mubr.f32.gmra.mxu0 %v1410
    %v1511 = vpop.f32.mrf.mxu0
    %v1512 = vadd.f32 %v1389, %v1511
    %v1513 = vpop.f32.mrf.mxu0
    %1514 = vmatprep.mubr.f32.mxu0 0.0
    %1515 = vmatmul.mubr.f32.gmra.mxu0 %v1413
    %v1516 = vpop.f32.mrf.mxu0
    %v1517 = vadd.f32 %v1389, %v1516
    %v1518 = vpop.f32.mrf.mxu0
    %1519 = vdwg.mxu0
    %v1520 = vmax.f32 %v1482, 0.0
    %v1521 = vmax.f32 %v1487, 0.0
    %v1522 = vmax.f32 %v1492, 0.0
    %v1523 = vmax.f32 %v1497, 0.0
    %v1524 = vmax.f32 %v1502, 0.0
    %v1525 = vmax.f32 %v1507, 0.0
    %v1526 = vmax.f32 %v1512, 0.0
    %v1527 = vmax.f32 %v1517, 0.0
    %v1528 = vld [vmem:[%s8] sm:$0xff]
    %v1529 = vld [vmem:[%s8 + $0x8] sm:$0xff]
    %v1530 = vld [vmem:[%s8 + $0x10] sm:$0xff]
    %v1531 = vld [vmem:[%s8 + $0x18] sm:$0xff]
    %v1532 = vld [vmem:[%s8 + $0x20] sm:$0xff]
    %v1533 = vld [vmem:[%s8 + $0x28] sm:$0xff]
    %v1534 = vld [vmem:[%s8 + $0x30] sm:$0xff]
    %v1535 = vld [vmem:[%s8 + $0x38] sm:$0xff]
    %v1536 = vld [vmem:[#allocation9] sm:$0x1]
    %v1538 = vlaneseq
    %v1539 = vshrl.u32 %v1538, 7
    %v1540 = vsub.s32 0, %v1539
    %v1541 = vrot.slane %v1536, %v1540
    %v1544 = vsel %vm401, %v1520, 0
    %v1547 = vsel %vm401, %v1521, 0
    %v1550 = vsel %vm401, %v1522, 0
    %v1553 = vsel %vm401, %v1523, 0
    %v1556 = vsel %vm401, %v1524, 0
    %v1559 = vsel %vm401, %v1525, 0
    %v1562 = vsel %vm401, %v1526, 0
    %v1565 = vsel %vm401, %v1527, 0
    %1567 = vmatprep.subr.mxu0 0.0
    %1568 = vmatpush1.msra.mxu0 0.0
    %1569 = vmatprep.subr.mxu0 0.0
    %1570 = vmatpush1.msra.mxu0 0.0
    %1571 = vmatprep.subr.mxu0 0.0
    %1572 = vmatpush1.msra.mxu0 0.0
    %1573 = vmatprep.subr.mxu0 0.0
    %1574 = vmatpush1.msra.mxu0 0.0
    %1575 = vmatprep.subr.mxu0 0.0
    %1576 = vmatpush1.msra.mxu0 0.0
    %1577 = vmatprep.subr.mxu0 0.0
    %1578 = vmatpush1.msra.mxu0 0.0
    %1579 = vmatprep.subr.mxu0 0.0
    %1580 = vmatpush1.msra.mxu0 0.0
    %1581 = vmatprep.subr.mxu0 0.0
    %1582 = vmatpush1.msra.mxu0 0.0
    %1583 = vmatprep.subr.mxu0 0.0
    %1584 = vmatpush1.msra.mxu0 %v1535
    %1585 = vmatprep.subr.mxu0 0.0
    %1586 = vmatpush1.msra.mxu0 %v1534
    %1587 = vmatprep.subr.mxu0 0.0
    %1588 = vmatpush1.msra.mxu0 %v1533
    %1589 = vmatprep.subr.mxu0 0.0
    %1590 = vmatpush1.msra.mxu0 %v1532
    %1591 = vmatprep.subr.mxu0 0.0
    %1592 = vmatpush1.msra.mxu0 %v1531
    %1593 = vmatprep.subr.mxu0 0.0
    %1594 = vmatpush1.msra.mxu0 %v1530
    %1595 = vmatprep.subr.mxu0 0.0
    %1596 = vmatpush1.msra.mxu0 %v1529
    %1597 = vmatprep.subr.mxu0 0.0
    %1598 = vmatpush1.msra.mxu0 %v1528
    %1599 = vmatprep.subr.mxu0 0.0
    %1600 = vmatpush2.msra.mxu0 0.0
    %1601 = vmatprep.subr.mxu0 0.0
    %1602 = vmatpush2.msra.mxu0 0.0
    %1603 = vmatprep.subr.mxu0 0.0
    %1604 = vmatpush2.msra.mxu0 0.0
    %1605 = vmatprep.subr.mxu0 0.0
    %1606 = vmatpush2.msra.mxu0 0.0
    %1607 = vmatprep.subr.mxu0 0.0
    %1608 = vmatpush2.msra.mxu0 0.0
    %1609 = vmatprep.subr.mxu0 0.0
    %1610 = vmatpush2.msra.mxu0 0.0
    %1611 = vmatprep.subr.mxu0 0.0
    %1612 = vmatpush2.msra.mxu0 0.0
    %1613 = vmatprep.subr.mxu0 0.0
    %1614 = vmatpush2.msra.mxu0 0.0
    %1615 = vmatprep.subr.mxu0 0.0
    %1616 = vmatpush2.msra.mxu0 0.0
    %1617 = vmatprep.subr.mxu0 0.0
    %1618 = vmatpush2.msra.mxu0 0.0
    %1619 = vmatprep.subr.mxu0 0.0
    %1620 = vmatpush2.msra.mxu0 0.0
    %1621 = vmatprep.subr.mxu0 0.0
    %1622 = vmatpush2.msra.mxu0 0.0
    %1623 = vmatprep.subr.mxu0 0.0
    %1624 = vmatpush2.msra.mxu0 0.0
    %1625 = vmatprep.subr.mxu0 0.0
    %1626 = vmatpush2.msra.mxu0 0.0
    %1627 = vmatprep.subr.mxu0 0.0
    %1628 = vmatpush2.msra.mxu0 0.0
    %1629 = vmatprep.subr.mxu0 0.0
    %1630 = vmatpush2.msra.mxu0 0.0
    %1631 = vmatprep.mubr.f32.mxu0 0.0
    %1632 = vmatmul.mubr.f32.gmra.mxu0 %v1544
    %v1633 = vpop.f32.mrf.mxu0
    %v1634 = vadd.f32 %v1541, %v1633
    %v1635 = vpop.f32.mrf.mxu0
    %1636 = vmatprep.mubr.f32.mxu0 0.0
    %1637 = vmatmul.mubr.f32.gmra.mxu0 %v1547
    %v1638 = vpop.f32.mrf.mxu0
    %v1639 = vadd.f32 %v1541, %v1638
    %v1640 = vpop.f32.mrf.mxu0
    %1641 = vmatprep.mubr.f32.mxu0 0.0
    %1642 = vmatmul.mubr.f32.gmra.mxu0 %v1550
    %v1643 = vpop.f32.mrf.mxu0
    %v1644 = vadd.f32 %v1541, %v1643
    %v1645 = vpop.f32.mrf.mxu0
    %1646 = vmatprep.mubr.f32.mxu0 0.0
    %1647 = vmatmul.mubr.f32.gmra.mxu0 %v1553
    %v1648 = vpop.f32.mrf.mxu0
    %v1649 = vadd.f32 %v1541, %v1648
    %v1650 = vpop.f32.mrf.mxu0
    %1651 = vmatprep.mubr.f32.mxu0 0.0
    %1652 = vmatmul.mubr.f32.gmra.mxu0 %v1556
    %v1653 = vpop.f32.mrf.mxu0
    %v1654 = vadd.f32 %v1541, %v1653
    %v1655 = vpop.f32.mrf.mxu0
    %1656 = vmatprep.mubr.f32.mxu0 0.0
    %1657 = vmatmul.mubr.f32.gmra.mxu0 %v1559
    %v1658 = vpop.f32.mrf.mxu0
    %v1659 = vadd.f32 %v1541, %v1658
    %v1660 = vpop.f32.mrf.mxu0
    %1661 = vmatprep.mubr.f32.mxu0 0.0
    %1662 = vmatmul.mubr.f32.gmra.mxu0 %v1562
    %v1663 = vpop.f32.mrf.mxu0
    %v1664 = vadd.f32 %v1541, %v1663
    %v1665 = vpop.f32.mrf.mxu0
    %1666 = vmatprep.mubr.f32.mxu0 0.0
    %1667 = vmatmul.mubr.f32.gmra.mxu0 %v1565
    %v1668 = vpop.f32.mrf.mxu0
    %v1669 = vadd.f32 %v1541, %v1668
    %v1670 = vpop.f32.mrf.mxu0
    %1671 = vdwg.mxu0
    %v1672 = vmax.f32 %v1634, 0.0
    %v1673 = vmax.f32 %v1639, 0.0
    %v1674 = vmax.f32 %v1644, 0.0
    %v1675 = vmax.f32 %v1649, 0.0
    %v1676 = vmax.f32 %v1654, 0.0
    %v1677 = vmax.f32 %v1659, 0.0
    %v1678 = vmax.f32 %v1664, 0.0
    %v1679 = vmax.f32 %v1669, 0.0
    %v1680 = vld [vmem:[%s10] sm:$0xff]
    %v1681 = vld [vmem:[%s10 + $0x8] sm:$0xff]
    %v1682 = vld [vmem:[%s10 + $0x10] sm:$0xff]
    %v1683 = vld [vmem:[%s10 + $0x18] sm:$0xff]
    %v1684 = vld [vmem:[%s11] sm:$0x1]
    %v1686 = vlaneseq
    %v1687 = vshrl.u32 %v1686, 7
    %v1688 = vsub.s32 0, %v1687
    %v1689 = vrot.slane %v1684, %v1688
    %v1692 = vsel %vm264, %v1672, 0
    %v1695 = vsel %vm264, %v1673, 0
    %v1698 = vsel %vm264, %v1674, 0
    %v1701 = vsel %vm264, %v1675, 0
    %v1704 = vsel %vm264, %v1676, 0
    %v1707 = vsel %vm264, %v1677, 0
    %v1710 = vsel %vm264, %v1678, 0
    %v1713 = vsel %vm264, %v1679, 0
    %1715 = vmatprep.subr.mxu0 0.0
    %1716 = vmatpush1.msra.mxu0 0.0
    %1717 = vmatprep.subr.mxu0 0.0
    %1718 = vmatpush1.msra.mxu0 0.0
    %1719 = vmatprep.subr.mxu0 0.0
    %1720 = vmatpush1.msra.mxu0 0.0
    %1721 = vmatprep.subr.mxu0 0.0
    %1722 = vmatpush1.msra.mxu0 0.0
    %1723 = vmatprep.subr.mxu0 0.0
    %1724 = vmatpush1.msra.mxu0 0.0
    %1725 = vmatprep.subr.mxu0 0.0
    %1726 = vmatpush1.msra.mxu0 0.0
    %1727 = vmatprep.subr.mxu0 0.0
    %1728 = vmatpush1.msra.mxu0 0.0
    %1729 = vmatprep.subr.mxu0 0.0
    %1730 = vmatpush1.msra.mxu0 0.0
    %1731 = vmatprep.subr.mxu0 0.0
    %1732 = vmatpush1.msra.mxu0 0.0
    %1733 = vmatprep.subr.mxu0 0.0
    %1734 = vmatpush1.msra.mxu0 0.0
    %1735 = vmatprep.subr.mxu0 0.0
    %1736 = vmatpush1.msra.mxu0 0.0
    %1737 = vmatprep.subr.mxu0 0.0
    %1738 = vmatpush1.msra.mxu0 0.0
    %1739 = vmatprep.subr.mxu0 0.0
    %1740 = vmatpush1.msra.mxu0 %v1683
    %1741 = vmatprep.subr.mxu0 0.0
    %1742 = vmatpush1.msra.mxu0 %v1682
    %1743 = vmatprep.subr.mxu0 0.0
    %1744 = vmatpush1.msra.mxu0 %v1681
    %1745 = vmatprep.subr.mxu0 0.0
    %1746 = vmatpush1.msra.mxu0 %v1680
    %1747 = vmatprep.subr.mxu0 0.0
    %1748 = vmatpush2.msra.mxu0 0.0
    %1749 = vmatprep.subr.mxu0 0.0
    %1750 = vmatpush2.msra.mxu0 0.0
    %1751 = vmatprep.subr.mxu0 0.0
    %1752 = vmatpush2.msra.mxu0 0.0
    %1753 = vmatprep.subr.mxu0 0.0
    %1754 = vmatpush2.msra.mxu0 0.0
    %1755 = vmatprep.subr.mxu0 0.0
    %1756 = vmatpush2.msra.mxu0 0.0
    %1757 = vmatprep.subr.mxu0 0.0
    %1758 = vmatpush2.msra.mxu0 0.0
    %1759 = vmatprep.subr.mxu0 0.0
    %1760 = vmatpush2.msra.mxu0 0.0
    %1761 = vmatprep.subr.mxu0 0.0
    %1762 = vmatpush2.msra.mxu0 0.0
    %1763 = vmatprep.subr.mxu0 0.0
    %1764 = vmatpush2.msra.mxu0 0.0
    %1765 = vmatprep.subr.mxu0 0.0
    %1766 = vmatpush2.msra.mxu0 0.0
    %1767 = vmatprep.subr.mxu0 0.0
    %1768 = vmatpush2.msra.mxu0 0.0
    %1769 = vmatprep.subr.mxu0 0.0
    %1770 = vmatpush2.msra.mxu0 0.0
    %1771 = vmatprep.subr.mxu0 0.0
    %1772 = vmatpush2.msra.mxu0 0.0
    %1773 = vmatprep.subr.mxu0 0.0
    %1774 = vmatpush2.msra.mxu0 0.0
    %1775 = vmatprep.subr.mxu0 0.0
    %1776 = vmatpush2.msra.mxu0 0.0
    %1777 = vmatprep.subr.mxu0 0.0
    %1778 = vmatpush2.msra.mxu0 0.0
    %1779 = vmatprep.mubr.f32.mxu0 0.0
    %1780 = vmatmul.mubr.f32.gmra.mxu0 %v1692
    %v1781 = vpop.f32.mrf.mxu0
    %v1782 = vadd.f32 %v1689, %v1781
    %v1783 = vpop.f32.mrf.mxu0
    %1784 = vmatprep.mubr.f32.mxu0 0.0
    %1785 = vmatmul.mubr.f32.gmra.mxu0 %v1695
    %v1786 = vpop.f32.mrf.mxu0
    %v1787 = vadd.f32 %v1689, %v1786
    %v1788 = vpop.f32.mrf.mxu0
    %1789 = vmatprep.mubr.f32.mxu0 0.0
    %1790 = vmatmul.mubr.f32.gmra.mxu0 %v1698
    %v1791 = vpop.f32.mrf.mxu0
    %v1792 = vadd.f32 %v1689, %v1791
    %v1793 = vpop.f32.mrf.mxu0
    %1794 = vmatprep.mubr.f32.mxu0 0.0
    %1795 = vmatmul.mubr.f32.gmra.mxu0 %v1701
    %v1796 = vpop.f32.mrf.mxu0
    %v1797 = vadd.f32 %v1689, %v1796
    %v1798 = vpop.f32.mrf.mxu0
    %1799 = vmatprep.mubr.f32.mxu0 0.0
    %1800 = vmatmul.mubr.f32.gmra.mxu0 %v1704
    %v1801 = vpop.f32.mrf.mxu0
    %v1802 = vadd.f32 %v1689, %v1801
    %v1803 = vpop.f32.mrf.mxu0
    %1804 = vmatprep.mubr.f32.mxu0 0.0
    %1805 = vmatmul.mubr.f32.gmra.mxu0 %v1707
    %v1806 = vpop.f32.mrf.mxu0
    %v1807 = vadd.f32 %v1689, %v1806
    %v1808 = vpop.f32.mrf.mxu0
    %1809 = vmatprep.mubr.f32.mxu0 0.0
    %1810 = vmatmul.mubr.f32.gmra.mxu0 %v1710
    %v1811 = vpop.f32.mrf.mxu0
    %v1812 = vadd.f32 %v1689, %v1811
    %v1813 = vpop.f32.mrf.mxu0
    %1814 = vmatprep.mubr.f32.mxu0 0.0
    %1815 = vmatmul.mubr.f32.gmra.mxu0 %v1713
    %v1816 = vpop.f32.mrf.mxu0
    %v1817 = vadd.f32 %v1689, %v1816
    %v1818 = vpop.f32.mrf.mxu0
    %1819 = vdwg.mxu0
    %vm1820 = vcmask 31744
    %1821 = vst.msk [vmem:[%s12] sm:$0xff] %vm1820, %v1782
    %1822 = vst.msk [vmem:[%s12 + $0x8] sm:$0xff] %vm1820, %v1787
    %1823 = vst.msk [vmem:[%s12 + $0x10] sm:$0xff] %vm1820, %v1792
    %1824 = vst.msk [vmem:[%s12 + $0x18] sm:$0xff] %vm1820, %v1797
    %1825 = vst.msk [vmem:[%s12 + $0x20] sm:$0xff] %vm1820, %v1802
    %1826 = vst.msk [vmem:[%s12 + $0x28] sm:$0xff] %vm1820, %v1807
    %1827 = vst.msk [vmem:[%s12 + $0x30] sm:$0xff] %vm1820, %v1812
    %1828 = vst.msk [vmem:[%s12 + $0x38] sm:$0xff] %vm1820, %v1817
    // Predicated region
    $region70: #{tpu_custom_call.1} parent=1 // pred_check
      _
    $region71: #{tpu_custom_call.1} parent=1 // pred_check_branch
      %1830 = sbr.rel (0) target = $region73
    $region72: #{tpu_custom_call.1} parent=1 // pred_region
      _
    $region73: #{tpu_custom_call.1} parent=1 // pred_fallthru
      _
    // Predicated region
    $region74: #{tpu_custom_call.1} parent=1 // pred_check
      _
    $region75: #{tpu_custom_call.1} parent=1 // pred_check_branch
      %1832 = sbr.rel (0) target = $region77
    $region76: #{tpu_custom_call.1} parent=1 // pred_region
      _
    $region77: #{tpu_custom_call.1} parent=1 // pred_fallthru
      _
    // Predicated region
    $region78: #{tpu_custom_call.1} parent=1 // pred_check
      _
    $region79: #{tpu_custom_call.1} parent=1 // pred_check_branch
      %1834 = sbr.rel (0) target = $region81
    $region80: #{tpu_custom_call.1} parent=1 // pred_region
      _
    $region81: #{tpu_custom_call.1} parent=1 // pred_fallthru
      _
    // Predicated region
    $region82: #{tpu_custom_call.1} parent=1 // pred_check
      _
    $region83: #{tpu_custom_call.1} parent=1 // pred_check_branch
      %1836 = sbr.rel (0) target = $region85
    $region84: #{tpu_custom_call.1} parent=1 // pred_region
      _
    $region85: #{tpu_custom_call.1} parent=1 // pred_fallthru
      _
    %1837 = vsyncpa [#allocation3], 1
    %1838 = vsyncpa [#allocation5], 1
    %1839 = vsyncpa [#allocation8], 1

</llo_original>
